<compile_context>
chip_gen: v7x
topology: tpu7x:2x2x1
jax: 0.10.0
libtpu: 0.0.40
codegen_flags: <defaults>
</compile_context>

<pallas_src>
import functools

import jax
import jax.numpy as jnp
from jax import lax
from jax.experimental import pallas as pl
from jax.experimental.pallas import tpu as pltpu

LANES = 128   # TPU vreg lane width
TM = 256      # row tile over B*H*W (grid of 2 at toy size -> both v7x TCs busy)


# ---------------------------------------------------------------------------
# Fused Pallas kernel: backbone matmul+ReLU (teacher|student), block-diagonal
# head matmul, lane-dense student-head writeback, and distillation-MSE partial.
# ---------------------------------------------------------------------------
def _distill_fused_kernel(cols_ref, wbb_ref, bbb_ref, whd_ref, bhd_ref,
                          invn_ref, s_out_ref, loss_ref, *, tm, nh_pad,
                          m_valid, mask_rows):
    # Backbone for teacher|student in one MXU pass (shared im2col LHS).
    # bf16 operands, f32 accumulation; bias/ReLU stay f32.
    feat = jnp.dot(cols_ref[...], wbb_ref[...],
                   preferred_element_type=jnp.float32)
    feat = jnp.maximum(feat + bbb_ref[...], 0.0)            # (tm, 2*c_pad) f32

    # Block-diagonal head matmul -> [teacher_heads | student_heads]; each head
    # block is zero-padded to a 128-lane boundary so the slices below are
    # vreg-aligned views (no relayout).
    heads = jnp.dot(feat.astype(jnp.bfloat16), whd_ref[...],
                    preferred_element_type=jnp.float32) + bhd_ref[...]
    t_heads = heads[:, :nh_pad]
    s_heads = heads[:, nh_pad:]

    # Student heads: lane-dense (tm, 128) slab -> unmasked full-width stores.
    s_out_ref[...] = s_heads.astype(s_out_ref.dtype)

    # Distillation MSE partial; teacher activations never leave VMEM.
    d = t_heads - s_heads
    if mask_rows:  # static: only emitted when M was padded up to the tile grid
        row = pl.program_id(0) * tm + lax.broadcasted_iota(jnp.int32, (tm, 1), 0)
        d = jnp.where(row < m_valid, d, 0.0)
    d2 = d * d * invn_ref[...]        # per-column 1/(M*C) weights; 0 on pads

    # Reduce the (tm, 128) partial down to one vreg of useful data (no
    # jnp.full broadcast, no in-kernel cross-lane reduce); wrapper finishes.
    part8 = d2[0:8, :]
    for g in range(1, tm // 8):
        part8 = part8 + d2[g * 8:(g + 1) * 8, :]
    loss_ref[...] = part8


# ---------------------------------------------------------------------------
# Forward pass (wrapper).  im2col + weight fusion/padding are XLA glue; the
# whole teacher+student compute and the loss run in one pallas_call.
# ---------------------------------------------------------------------------
def model_distill_forward(x_nchw, teacher_params, student_params, *, tm=TM):
    # teacher.eval() + torch.no_grad(): forward-only; stop_gradient documents it.
    # TODO(synk): if the student is trained through this kernel, wrap the
    # pallas_call in a jax.custom_vjp (or use the XLA reference for backward).
    tp = jax.tree_util.tree_map(lax.stop_gradient, teacher_params)
    sp = student_params

    B, c_in, H, W = x_nchw.shape
    c_mid = tp["backbone_w"].shape[-1]
    c_loc = tp["mbox_loc_w"].shape[-1]
    c_conf = tp["mbox_conf_w"].shape[-1]
    nh = c_loc + c_conf
    c_pad = ((c_mid + LANES - 1) // LANES) * LANES   # lane-aligned feature block
    nh_pad = ((nh + LANES - 1) // LANES) * LANES     # lane-aligned head block

    x = jnp.transpose(x_nchw, (0, 2, 3, 1))          # NCHW -> NHWC
    # im2col for the 3x3 SAME conv (XLA glue).
    # TODO(synk): at real SSD resolutions do im2col in-kernel (DMA a padded
    # NHWC row tile with a 1-row halo and accumulate 9 shifted matmuls) to cut
    # HBM input reads ~9x instead of materializing `cols`.
    xp = jnp.pad(x, ((0, 0), (1, 1), (1, 1), (0, 0)))
    patches = jnp.concatenate(
        [xp[:, i:i + H, j:j + W, :] for i in range(3) for j in range(3)],
        axis=-1)
    M = B * H * W
    K9 = 9 * c_in
    cols = patches.reshape(M, K9)

    # Fused, 128-lane-padded weights: teacher|student backbone side-by-side,
    # block-diagonal heads.  Pad columns carry zero weight AND zero bias, so
    # they stay exactly 0 through ReLU and the heads; inv_col also zeros them
    # in the loss.
    def bb_block(p):
        w = p["backbone_w"].reshape(K9, c_mid)
        return (jnp.pad(w, ((0, 0), (0, c_pad - c_mid))),
                jnp.pad(p["backbone_b"], ((0, 0), (0, c_pad - c_mid))))

    def head_block(p):
        w = jnp.concatenate([p["mbox_loc_w"], p["mbox_conf_w"]], axis=1)
        b = jnp.concatenate([p["mbox_loc_b"], p["mbox_conf_b"]], axis=1)
        return (jnp.pad(w, ((0, c_pad - c_mid), (0, nh_pad - nh))),
                jnp.pad(b, ((0, 0), (0, nh_pad - nh))))

    wt_bb, bt_bb = bb_block(tp)
    ws_bb, bs_bb = bb_block(sp)
    w_bb = jnp.concatenate([wt_bb, ws_bb], axis=1)               # (K9, 2*c_pad)
    b_bb = jnp.concatenate([bt_bb, bs_bb], axis=1)               # (1, 2*c_pad)

    wt_h, bt_h = head_block(tp)
    ws_h, bs_h = head_block(sp)
    z = jnp.zeros((c_pad, nh_pad), jnp.float32)
    w_heads = jnp.concatenate(
        [jnp.concatenate([wt_h, z], axis=1),
         jnp.concatenate([z, ws_h], axis=1)], axis=0)            # (2*c_pad, 2*nh_pad)
    b_heads = jnp.concatenate([bt_h, bs_h], axis=1)              # (1, 2*nh_pad)

    # Per-column MSE weights (grid-invariant; computed once here, not per tile).
    col = jnp.arange(nh_pad)
    inv_col = jnp.where(
        col < c_loc, 1.0 / (M * c_loc),
        jnp.where(col < nh, 1.0 / (M * c_conf), 0.0)
    ).astype(jnp.float32).reshape(1, nh_pad)

    # bf16 MXU operands; accumulation and the epilogue stay f32.
    cols_bf = cols.astype(jnp.bfloat16)
    w_bb = w_bb.astype(jnp.bfloat16)
    w_heads = w_heads.astype(jnp.bfloat16)

    grid_m = pl.cdiv(M, tm)
    m_pad = grid_m * tm
    if m_pad != M:
        cols_bf = jnp.pad(cols_bf, ((0, m_pad - M), (0, 0)))

    kernel = functools.partial(_distill_fused_kernel, tm=tm, nh_pad=nh_pad,
                               m_valid=M, mask_rows=(m_pad != M))
    s_pad, loss_parts = pl.pallas_call(
        kernel,
        out_shape=(jax.ShapeDtypeStruct((m_pad, nh_pad), jnp.float32),
                   jax.ShapeDtypeStruct((grid_m * 8, LANES), jnp.float32)),
        grid_spec=pltpu.PrefetchScalarGridSpec(
            num_scalar_prefetch=0,
            grid=(grid_m,),
            in_specs=[
                pl.BlockSpec((tm, K9), lambda i: (i, 0)),
                pl.BlockSpec((K9, 2 * c_pad), lambda i: (0, 0)),
                pl.BlockSpec((1, 2 * c_pad), lambda i: (0, 0)),
                pl.BlockSpec((2 * c_pad, 2 * nh_pad), lambda i: (0, 0)),
                pl.BlockSpec((1, 2 * nh_pad), lambda i: (0, 0)),
                pl.BlockSpec((1, nh_pad), lambda i: (0, 0)),
            ],
            out_specs=[
                pl.BlockSpec((tm, nh_pad), lambda i: (i, 0)),
                pl.BlockSpec((8, LANES), lambda i: (i, 0)),
            ],
        ),
        compiler_params=pltpu.CompilerParams(
            dimension_semantics=("parallel",)),
    )(cols_bf, w_bb, b_bb, w_heads, b_heads, inv_col)

    s_heads = s_pad[:M, :nh].reshape(B, H, W, nh)
    s_loc = jnp.transpose(s_heads[..., :c_loc], (0, 3, 1, 2))    # back to NCHW
    s_conf = jnp.transpose(s_heads[..., c_loc:], (0, 3, 1, 2))
    loss = jnp.sum(loss_parts)
    return (s_loc, s_conf), loss


# ---------------------------------------------------------------------------
# Deterministic parameter init + pure-JAX reference for verification.
# The reference uses the same bf16 MXU operands / f32 accumulation the kernel
# uses, so the comparison checks the Pallas plumbing, not bf16 rounding.
# ---------------------------------------------------------------------------
def init_params(key, c_in, c_mid, c_loc, c_conf):
    ks = jax.random.split(key, 6)
    return {
        "backbone_w": 0.1 * jax.random.normal(ks[0], (3, 3, c_in, c_mid), jnp.float32),
        "backbone_b": 0.1 * jax.random.normal(ks[1], (1, c_mid), jnp.float32),
        "mbox_loc_w": 0.1 * jax.random.normal(ks[2], (c_mid, c_loc), jnp.float32),
        "mbox_loc_b": 0.1 * jax.random.normal(ks[3], (1, c_loc), jnp.float32),
        "mbox_conf_w": 0.1 * jax.random.normal(ks[4], (c_mid, c_conf), jnp.float32),
        "mbox_conf_b": 0.1 * jax.random.normal(ks[5], (1, c_conf), jnp.float32),
    }


def ref_net(x_nhwc, p):
    feat = lax.conv_general_dilated(
        x_nhwc.astype(jnp.bfloat16), p["backbone_w"].astype(jnp.bfloat16),
        window_strides=(1, 1), padding="SAME",
        dimension_numbers=("NHWC", "HWIO", "NHWC"),
        preferred_element_type=jnp.float32)
    feat = jnp.maximum(feat + p["backbone_b"].reshape(1, 1, 1, -1), 0.0)
    fb = feat.astype(jnp.bfloat16)
    loc = jnp.einsum("bhwc,cn->bhwn", fb, p["mbox_loc_w"].astype(jnp.bfloat16),
                     preferred_element_type=jnp.float32) \
        + p["mbox_loc_b"].reshape(1, 1, 1, -1)
    conf = jnp.einsum("bhwc,cn->bhwn", fb, p["mbox_conf_w"].astype(jnp.bfloat16),
                      preferred_element_type=jnp.float32) \
        + p["mbox_conf_b"].reshape(1, 1, 1, -1)
    return loc, conf


def ref_forward(x_nchw, tp, sp):
    x = jnp.transpose(x_nchw, (0, 2, 3, 1))
    t_loc, t_conf = ref_net(x, tp)
    s_loc, s_conf = ref_net(x, sp)
    loss = jnp.mean((t_loc - s_loc) ** 2) + jnp.mean((t_conf - s_conf) ** 2)
    return (jnp.transpose(s_loc, (0, 3, 1, 2)),
            jnp.transpose(s_conf, (0, 3, 1, 2))), loss


if __name__ == "__main__":
    B, C_IN, H, W = 2, 4, 16, 16      # input x: NCHW, like the PyTorch module
    C_MID, C_LOC, C_CONF = 32, 16, 8  # backbone / mbox_loc / mbox_conf channels

    key = jax.random.PRNGKey(0)
    kx, kt, ks = jax.random.split(key, 3)
    x = jax.random.normal(kx, (B, C_IN, H, W), jnp.float32)
    teacher_params = init_params(kt, C_IN, C_MID, C_LOC, C_CONF)
    student_params = init_params(ks, C_IN, C_MID, C_LOC, C_CONF)

    fwd = jax.jit(model_distill_forward)
    (s_loc, s_conf), loss = fwd(x, teacher_params, student_params)
    jax.block_until_ready((s_loc, s_conf, loss))

    # Verify against a bf16-operand pure-JAX reference (f32 accumulation).
    (r_loc, r_conf), r_loss = ref_forward(x, teacher_params, student_params)
    assert jnp.allclose(s_loc, r_loc, atol=5e-3, rtol=5e-3)
    assert jnp.allclose(s_conf, r_conf, atol=5e-3, rtol=5e-3)
    assert jnp.allclose(loss, r_loss, atol=5e-3, rtol=5e-3)

    print("KERNEL_OK")
</pallas_src>

<mosaic_0001>
module attributes {stable_mosaic.version = 11 : i64} {
  func.func @_distill_fused_kernel(%arg0: i32, %arg1: memref<256x36xbf16, #tpu.memory_space<vmem>>, %arg2: memref<36x256xbf16, #tpu.memory_space<vmem>>, %arg3: memref<1x256xf32, #tpu.memory_space<vmem>>, %arg4: memref<256x256xbf16, #tpu.memory_space<vmem>>, %arg5: memref<1x256xf32, #tpu.memory_space<vmem>>, %arg6: memref<1x128xf32, #tpu.memory_space<vmem>>, %arg7: memref<256x128xf32, #tpu.memory_space<vmem>>, %arg8: memref<8x128xf32, #tpu.memory_space<vmem>>) attributes {dimension_semantics = [#tpu.dimension_semantics<parallel>], iteration_bounds = array<i64: 2>, scalar_prefetch = 0 : i64, scratch_operands = 0 : i64, tpu.core_type = #tpu.core_type<tc>, window_params = [{transform_indices = @transform_0, window_bounds = array<i64: 256, 36>}, {pipeline_mode = #tpu.pipeline_mode<synchronous>, transform_indices = @transform_1, window_bounds = array<i64: 36, 256>}, {pipeline_mode = #tpu.pipeline_mode<synchronous>, transform_indices = @transform_2, window_bounds = array<i64: 1, 256>}, {pipeline_mode = #tpu.pipeline_mode<synchronous>, transform_indices = @transform_3, window_bounds = array<i64: 256, 256>}, {pipeline_mode = #tpu.pipeline_mode<synchronous>, transform_indices = @transform_4, window_bounds = array<i64: 1, 256>}, {pipeline_mode = #tpu.pipeline_mode<synchronous>, transform_indices = @transform_5, window_bounds = array<i64: 1, 128>}, {transform_indices = @transform_6, window_bounds = array<i64: 256, 128>}, {transform_indices = @transform_7, window_bounds = array<i64: 8, 128>}]} {
    %c0 = arith.constant 0 : index
    %c0_0 = arith.constant 0 : index
    %0 = vector.load %arg1[%c0, %c0_0] : memref<256x36xbf16, #tpu.memory_space<vmem>>, vector<256x36xbf16>
    %c0_1 = arith.constant 0 : index
    %c0_2 = arith.constant 0 : index
    %1 = vector.load %arg2[%c0_1, %c0_2] : memref<36x256xbf16, #tpu.memory_space<vmem>>, vector<36x256xbf16>
    %cst = arith.constant dense<0.000000e+00> : vector<256x256xf32>
    %2 = tpu.matmul %0, %1, %cst {dimension_numbers = #tpu.dot_dimension_numbers<[1], [0], [0], [1], [0, 0, 1, 1], [], []>} : vector<256x36xbf16>, vector<36x256xbf16>, vector<256x256xf32> -> vector<256x256xf32>
    %c0_3 = arith.constant 0 : index
    %c0_4 = arith.constant 0 : index
    %3 = vector.load %arg3[%c0_3, %c0_4] : memref<1x256xf32, #tpu.memory_space<vmem>>, vector<1x256xf32>
    %4 = vector.broadcast %3 : vector<1x256xf32> to vector<256x256xf32>
    %5 = arith.addf %2, %4 : vector<256x256xf32>
    %cst_5 = arith.constant 0.000000e+00 : f32
    %6 = vector.broadcast %cst_5 : f32 to vector<256x256xf32>
    %7 = arith.maximumf %5, %6 : vector<256x256xf32>
    %8 = arith.truncf %7 : vector<256x256xf32> to vector<256x256xbf16>
    %c0_6 = arith.constant 0 : index
    %c0_7 = arith.constant 0 : index
    %9 = vector.load %arg4[%c0_6, %c0_7] : memref<256x256xbf16, #tpu.memory_space<vmem>>, vector<256x256xbf16>
    %cst_8 = arith.constant dense<0.000000e+00> : vector<256x256xf32>
    %10 = tpu.matmul %8, %9, %cst_8 {dimension_numbers = #tpu.dot_dimension_numbers<[1], [0], [0], [1], [0, 0, 1, 1], [], []>} : vector<256x256xbf16>, vector<256x256xbf16>, vector<256x256xf32> -> vector<256x256xf32>
    %c0_9 = arith.constant 0 : index
    %c0_10 = arith.constant 0 : index
    %11 = vector.load %arg5[%c0_9, %c0_10] : memref<1x256xf32, #tpu.memory_space<vmem>>, vector<1x256xf32>
    %12 = vector.broadcast %11 : vector<1x256xf32> to vector<256x256xf32>
    %13 = arith.addf %10, %12 : vector<256x256xf32>
    %14 = vector.extract_strided_slice %13 {offsets = [0, 0], sizes = [256, 128], strides = [1, 1]} : vector<256x256xf32> to vector<256x128xf32>
    %15 = vector.extract_strided_slice %13 {offsets = [0, 128], sizes = [256, 128], strides = [1, 1]} : vector<256x256xf32> to vector<256x128xf32>
    %c0_11 = arith.constant 0 : index
    %c0_12 = arith.constant 0 : index
    %16 = vector.load %arg7[%c0_11, %c0_12] : memref<256x128xf32, #tpu.memory_space<vmem>>, vector<256x128xf32>
    tpu.vector_store %arg7[%c0_11, %c0_12], %15 {strides = array<i32>} : memref<256x128xf32, #tpu.memory_space<vmem>>, vector<256x128xf32>,
    %17 = arith.subf %14, %15 : vector<256x128xf32>
    %18 = arith.mulf %17, %17 : vector<256x128xf32>
    %c0_13 = arith.constant 0 : index
    %c0_14 = arith.constant 0 : index
    %19 = vector.load %arg6[%c0_13, %c0_14] : memref<1x128xf32, #tpu.memory_space<vmem>>, vector<1x128xf32>
    %20 = vector.broadcast %19 : vector<1x128xf32> to vector<256x128xf32>
    %21 = arith.mulf %18, %20 : vector<256x128xf32>
    %22 = vector.extract_strided_slice %21 {offsets = [0, 0], sizes = [8, 128], strides = [1, 1]} : vector<256x128xf32> to vector<8x128xf32>
    %23 = vector.extract_strided_slice %21 {offsets = [8, 0], sizes = [8, 128], strides = [1, 1]} : vector<256x128xf32> to vector<8x128xf32>
    %24 = arith.addf %22, %23 : vector<8x128xf32>
    %25 = vector.extract_strided_slice %21 {offsets = [16, 0], sizes = [8, 128], strides = [1, 1]} : vector<256x128xf32> to vector<8x128xf32>
    %26 = arith.addf %24, %25 : vector<8x128xf32>
    %27 = vector.extract_strided_slice %21 {offsets = [24, 0], sizes = [8, 128], strides = [1, 1]} : vector<256x128xf32> to vector<8x128xf32>
    %28 = arith.addf %26, %27 : vector<8x128xf32>
    %29 = vector.extract_strided_slice %21 {offsets = [32, 0], sizes = [8, 128], strides = [1, 1]} : vector<256x128xf32> to vector<8x128xf32>
    %30 = arith.addf %28, %29 : vector<8x128xf32>
    %31 = vector.extract_strided_slice %21 {offsets = [40, 0], sizes = [8, 128], strides = [1, 1]} : vector<256x128xf32> to vector<8x128xf32>
    %32 = arith.addf %30, %31 : vector<8x128xf32>
    %33 = vector.extract_strided_slice %21 {offsets = [48, 0], sizes = [8, 128], strides = [1, 1]} : vector<256x128xf32> to vector<8x128xf32>
    %34 = arith.addf %32, %33 : vector<8x128xf32>
    %35 = vector.extract_strided_slice %21 {offsets = [56, 0], sizes = [8, 128], strides = [1, 1]} : vector<256x128xf32> to vector<8x128xf32>
    %36 = arith.addf %34, %35 : vector<8x128xf32>
    %37 = vector.extract_strided_slice %21 {offsets = [64, 0], sizes = [8, 128], strides = [1, 1]} : vector<256x128xf32> to vector<8x128xf32>
    %38 = arith.addf %36, %37 : vector<8x128xf32>
    %39 = vector.extract_strided_slice %21 {offsets = [72, 0], sizes = [8, 128], strides = [1, 1]} : vector<256x128xf32> to vector<8x128xf32>
    %40 = arith.addf %38, %39 : vector<8x128xf32>
    %41 = vector.extract_strided_slice %21 {offsets = [80, 0], sizes = [8, 128], strides = [1, 1]} : vector<256x128xf32> to vector<8x128xf32>
    %42 = arith.addf %40, %41 : vector<8x128xf32>
    %43 = vector.extract_strided_slice %21 {offsets = [88, 0], sizes = [8, 128], strides = [1, 1]} : vector<256x128xf32> to vector<8x128xf32>
    %44 = arith.addf %42, %43 : vector<8x128xf32>
    %45 = vector.extract_strided_slice %21 {offsets = [96, 0], sizes = [8, 128], strides = [1, 1]} : vector<256x128xf32> to vector<8x128xf32>
    %46 = arith.addf %44, %45 : vector<8x128xf32>
    %47 = vector.extract_strided_slice %21 {offsets = [104, 0], sizes = [8, 128], strides = [1, 1]} : vector<256x128xf32> to vector<8x128xf32>
    %48 = arith.addf %46, %47 : vector<8x128xf32>
    %49 = vector.extract_strided_slice %21 {offsets = [112, 0], sizes = [8, 128], strides = [1, 1]} : vector<256x128xf32> to vector<8x128xf32>
    %50 = arith.addf %48, %49 : vector<8x128xf32>
    %51 = vector.extract_strided_slice %21 {offsets = [120, 0], sizes = [8, 128], strides = [1, 1]} : vector<256x128xf32> to vector<8x128xf32>
    %52 = arith.addf %50, %51 : vector<8x128xf32>
    %53 = vector.extract_strided_slice %21 {offsets = [128, 0], sizes = [8, 128], strides = [1, 1]} : vector<256x128xf32> to vector<8x128xf32>
    %54 = arith.addf %52, %53 : vector<8x128xf32>
    %55 = vector.extract_strided_slice %21 {offsets = [136, 0], sizes = [8, 128], strides = [1, 1]} : vector<256x128xf32> to vector<8x128xf32>
    %56 = arith.addf %54, %55 : vector<8x128xf32>
    %57 = vector.extract_strided_slice %21 {offsets = [144, 0], sizes = [8, 128], strides = [1, 1]} : vector<256x128xf32> to vector<8x128xf32>
    %58 = arith.addf %56, %57 : vector<8x128xf32>
    %59 = vector.extract_strided_slice %21 {offsets = [152, 0], sizes = [8, 128], strides = [1, 1]} : vector<256x128xf32> to vector<8x128xf32>
    %60 = arith.addf %58, %59 : vector<8x128xf32>
    %61 = vector.extract_strided_slice %21 {offsets = [160, 0], sizes = [8, 128], strides = [1, 1]} : vector<256x128xf32> to vector<8x128xf32>
    %62 = arith.addf %60, %61 : vector<8x128xf32>
    %63 = vector.extract_strided_slice %21 {offsets = [168, 0], sizes = [8, 128], strides = [1, 1]} : vector<256x128xf32> to vector<8x128xf32>
    %64 = arith.addf %62, %63 : vector<8x128xf32>
    %65 = vector.extract_strided_slice %21 {offsets = [176, 0], sizes = [8, 128], strides = [1, 1]} : vector<256x128xf32> to vector<8x128xf32>
    %66 = arith.addf %64, %65 : vector<8x128xf32>
    %67 = vector.extract_strided_slice %21 {offsets = [184, 0], sizes = [8, 128], strides = [1, 1]} : vector<256x128xf32> to vector<8x128xf32>
    %68 = arith.addf %66, %67 : vector<8x128xf32>
    %69 = vector.extract_strided_slice %21 {offsets = [192, 0], sizes = [8, 128], strides = [1, 1]} : vector<256x128xf32> to vector<8x128xf32>
    %70 = arith.addf %68, %69 : vector<8x128xf32>
    %71 = vector.extract_strided_slice %21 {offsets = [200, 0], sizes = [8, 128], strides = [1, 1]} : vector<256x128xf32> to vector<8x128xf32>
    %72 = arith.addf %70, %71 : vector<8x128xf32>
    %73 = vector.extract_strided_slice %21 {offsets = [208, 0], sizes = [8, 128], strides = [1, 1]} : vector<256x128xf32> to vector<8x128xf32>
    %74 = arith.addf %72, %73 : vector<8x128xf32>
    %75 = vector.extract_strided_slice %21 {offsets = [216, 0], sizes = [8, 128], strides = [1, 1]} : vector<256x128xf32> to vector<8x128xf32>
    %76 = arith.addf %74, %75 : vector<8x128xf32>
    %77 = vector.extract_strided_slice %21 {offsets = [224, 0], sizes = [8, 128], strides = [1, 1]} : vector<256x128xf32> to vector<8x128xf32>
    %78 = arith.addf %76, %77 : vector<8x128xf32>
    %79 = vector.extract_strided_slice %21 {offsets = [232, 0], sizes = [8, 128], strides = [1, 1]} : vector<256x128xf32> to vector<8x128xf32>
    %80 = arith.addf %78, %79 : vector<8x128xf32>
    %81 = vector.extract_strided_slice %21 {offsets = [240, 0], sizes = [8, 128], strides = [1, 1]} : vector<256x128xf32> to vector<8x128xf32>
    %82 = arith.addf %80, %81 : vector<8x128xf32>
    %83 = vector.extract_strided_slice %21 {offsets = [248, 0], sizes = [8, 128], strides = [1, 1]} : vector<256x128xf32> to vector<8x128xf32>
    %84 = arith.addf %82, %83 : vector<8x128xf32>
    %c0_15 = arith.constant 0 : index
    %c0_16 = arith.constant 0 : index
    %85 = vector.load %arg8[%c0_15, %c0_16] : memref<8x128xf32, #tpu.memory_space<vmem>>, vector<8x128xf32>
    tpu.vector_store %arg8[%c0_15, %c0_16], %84 {strides = array<i32>} : memref<8x128xf32, #tpu.memory_space<vmem>>, vector<8x128xf32>,
    return
  }
  func.func @transform_0(%arg0: i32) -> (i32, i32) {
    %c0_i32 = arith.constant 0 : i32
    %c0_i32_0 = arith.constant 0 : i32
    return %arg0, %c0_i32 : i32, i32
  }
  func.func @transform_1(%arg0: i32) -> (i32, i32) {
    %c0_i32 = arith.constant 0 : i32
    %c0_i32_0 = arith.constant 0 : i32
    %c0_i32_1 = arith.constant 0 : i32
    return %c0_i32, %c0_i32_0 : i32, i32
  }
  func.func @transform_2(%arg0: i32) -> (i32, i32) {
    %c0_i32 = arith.constant 0 : i32
    %c0_i32_0 = arith.constant 0 : i32
    %c0_i32_1 = arith.constant 0 : i32
    return %c0_i32, %c0_i32_0 : i32, i32
  }
  func.func @transform_3(%arg0: i32) -> (i32, i32) {
    %c0_i32 = arith.constant 0 : i32
    %c0_i32_0 = arith.constant 0 : i32
    %c0_i32_1 = arith.constant 0 : i32
    return %c0_i32, %c0_i32_0 : i32, i32
  }
  func.func @transform_4(%arg0: i32) -> (i32, i32) {
    %c0_i32 = arith.constant 0 : i32
    %c0_i32_0 = arith.constant 0 : i32
    %c0_i32_1 = arith.constant 0 : i32
    return %c0_i32, %c0_i32_0 : i32, i32
  }
  func.func @transform_5(%arg0: i32) -> (i32, i32) {
    %c0_i32 = arith.constant 0 : i32
    %c0_i32_0 = arith.constant 0 : i32
    %c0_i32_1 = arith.constant 0 : i32
    return %c0_i32, %c0_i32_0 : i32, i32
  }
  func.func @transform_6(%arg0: i32) -> (i32, i32) {
    %c0_i32 = arith.constant 0 : i32
    %c0_i32_0 = arith.constant 0 : i32
    return %arg0, %c0_i32 : i32, i32
  }
  func.func @transform_7(%arg0: i32) -> (i32, i32) {
    %c0_i32 = arith.constant 0 : i32
    %c0_i32_0 = arith.constant 0 : i32
    return %arg0, %c0_i32 : i32, i32
  }
}

</mosaic_0001>

<llo_original>
// kernel: model_distill_forward.1
$region0: #{model_distill_forward.1}
  #allocation0 [shape = 'u32[]', space=smem, size = 0x4, offset = 0x4, fixed_abs, tag = 'smem constant byte address 0x4 - core index']
  #allocation1 [shape = 'u32[144,128]{1,0:T(1,128)}', space=vmem, size = 0x12000, scoped, tag = 'internal scratch']
  %s0 = inlined_call_operand.vmem [shape: bf16[512,36], index: 0, kind: input, shape index: {}]
  %s1 = inlined_call_operand.vmem [shape: bf16[36,256], index: 1, kind: input, shape index: {}]
  %s2 = inlined_call_operand.vmem [shape: f32[1,256], index: 2, kind: input, shape index: {}]
  %s3 = inlined_call_operand.vmem [shape: bf16[256,256], index: 3, kind: input, shape index: {}]
  %s4 = inlined_call_operand.vmem [shape: f32[1,256], index: 4, kind: input, shape index: {}]
  %s5 = inlined_call_operand.vmem [shape: f32[1,128], index: 5, kind: input, shape index: {}]
  %s6 = inlined_call_operand.vmem [shape: f32[512,128], index: 6, kind: output, shape index: {0}]
  %s7 = inlined_call_operand.vmem [shape: f32[16,128], index: 7, kind: output, shape index: {1}]
  %8 = xla_tuple %s6, %s7
  %s9 = sld [smem:[#allocation0]]
  $region65: #{model_distill_forward.1} parent=0
    _
  %s11 = ssub.s32 1, %s9
  %s12 = scalar_select 0, %s11, %s9
  loop: start=0, step=1, limit=4
  $region2: #{model_distill_forward.1} parent=0 // loop_pre_header
    _
  $region3: #{model_distill_forward.1} parent=0 // loop_header
    %s14 = sphi 0, %s18
    %p15 = scmp.ge.s32.totalorder %s14, 4
    %s24 = sphi 0, %s26
    %s27 = sphi 0, %s24
    %s28 = sphi 0, %s27
    %s44 = sphi 0, %s28
    %s48 = sphi 0, %s48
    %s50 = sphi 0, %s48
    %s51 = sphi 0, %s50
    %s65 = sphi 0, %s51
    %s69 = sphi 0, %s69
    %s71 = sphi 0, %s69
    %s72 = sphi 0, %s71
    %s86 = sphi 0, %s72
    %s90 = sphi 0, %s90
    %s92 = sphi 0, %s90
    %s93 = sphi 0, %s92
    %s107 = sphi 0, %s93
    %s111 = sphi 0, %s111
    %s113 = sphi 0, %s111
    %s114 = sphi 0, %s113
    %s128 = sphi 0, %s114
    %s132 = sphi 0, %s132
    %s134 = sphi 0, %s132
    %s135 = sphi 0, %s134
    %s149 = sphi 0, %s135
    %s155 = sphi 0, %s157
    %s158 = sphi 0, %s155
    %s159 = sphi 0, %s158
    %s175 = sphi 0, %s159
    %s181 = sphi 0, %s183
    %s184 = sphi 0, %s181
    %s185 = sphi 0, %s184
    %s201 = sphi 0, %s185
  $region4: #{model_distill_forward.1} parent=0 // loop_header_branch
    %17 = sbr.rel (%p15) target = $region8
  $region5: #{model_distill_forward.1} parent=0 // loop_body
    %s19 = ssub.s32 %s14, 1
    %s20 = ssub.s32 %s14, 2
    %s21 = sadd.s32 %s14, 1
    %s22 = ssub.s32 %s14, %s21
    %p23 = scmp.eq.s32.totalorder %s22, 0
    %s25 = sadd.s32 %s24, 1
    %s26 = scalar_select %p23, %s24, %s25
    %p29 = pneg %p23
    %p30 = scmp.eq.s32.totalorder %s14, 1
    %p31 = por %p29, %p30
    %p32 = scmp.ne.s32.totalorder %s24, %s27
    %p33 = scmp.eq.s32.totalorder %s14, 0
    %p34 = por %p32, %p33
    %p35 = scmp.ne.s32.totalorder %s24, %s27
    %p36 = scmp.eq.s32.totalorder %s19, 1
    %p37 = por %p35, %p36
    %p38 = scmp.ne.s32.totalorder %s27, %s28
    %p39 = scmp.eq.s32.totalorder %s19, 0
    %p40 = por %p38, %p39
    %p41 = scmp.ne.s32.totalorder %s27, %s28
    %p42 = scmp.eq.s32.totalorder %s20, 1
    %p43 = por %p41, %p42
    %p45 = scmp.ne.s32.totalorder %s28, %s44
    %p46 = scmp.eq.s32.totalorder %s20, 0
    %p47 = por %p45, %p46
    %s49 = sadd.s32 %s48, 1
    %p52 = scmp.eq.s32.totalorder %s14, 1
    %p53 = scmp.ne.s32.totalorder %s48, %s50
    %p54 = scmp.eq.s32.totalorder %s14, 0
    %p55 = por %p53, %p54
    %p56 = scmp.ne.s32.totalorder %s48, %s50
    %p57 = scmp.eq.s32.totalorder %s19, 1
    %p58 = por %p56, %p57
    %p59 = scmp.ne.s32.totalorder %s50, %s51
    %p60 = scmp.eq.s32.totalorder %s19, 0
    %p61 = por %p59, %p60
    %p62 = scmp.ne.s32.totalorder %s50, %s51
    %p63 = scmp.eq.s32.totalorder %s20, 1
    %p64 = por %p62, %p63
    %p66 = scmp.ne.s32.totalorder %s51, %s65
    %p67 = scmp.eq.s32.totalorder %s20, 0
    %p68 = por %p66, %p67
    %s70 = sadd.s32 %s69, 1
    %p73 = scmp.eq.s32.totalorder %s14, 1
    %p74 = scmp.ne.s32.totalorder %s69, %s71
    %p75 = scmp.eq.s32.totalorder %s14, 0
    %p76 = por %p74, %p75
    %p77 = scmp.ne.s32.totalorder %s69, %s71
    %p78 = scmp.eq.s32.totalorder %s19, 1
    %p79 = por %p77, %p78
    %p80 = scmp.ne.s32.totalorder %s71, %s72
    %p81 = scmp.eq.s32.totalorder %s19, 0
    %p82 = por %p80, %p81
    %p83 = scmp.ne.s32.totalorder %s71, %s72
    %p84 = scmp.eq.s32.totalorder %s20, 1
    %p85 = por %p83, %p84
    %p87 = scmp.ne.s32.totalorder %s72, %s86
    %p88 = scmp.eq.s32.totalorder %s20, 0
    %p89 = por %p87, %p88
    %s91 = sadd.s32 %s90, 1
    %p94 = scmp.eq.s32.totalorder %s14, 1
    %p95 = scmp.ne.s32.totalorder %s90, %s92
    %p96 = scmp.eq.s32.totalorder %s14, 0
    %p97 = por %p95, %p96
    %p98 = scmp.ne.s32.totalorder %s90, %s92
    %p99 = scmp.eq.s32.totalorder %s19, 1
    %p100 = por %p98, %p99
    %p101 = scmp.ne.s32.totalorder %s92, %s93
    %p102 = scmp.eq.s32.totalorder %s19, 0
    %p103 = por %p101, %p102
    %p104 = scmp.ne.s32.totalorder %s92, %s93
    %p105 = scmp.eq.s32.totalorder %s20, 1
    %p106 = por %p104, %p105
    %p108 = scmp.ne.s32.totalorder %s93, %s107
    %p109 = scmp.eq.s32.totalorder %s20, 0
    %p110 = por %p108, %p109
    %s112 = sadd.s32 %s111, 1
    %p115 = scmp.eq.s32.totalorder %s14, 1
    %p116 = scmp.ne.s32.totalorder %s111, %s113
    %p117 = scmp.eq.s32.totalorder %s14, 0
    %p118 = por %p116, %p117
    %p119 = scmp.ne.s32.totalorder %s111, %s113
    %p120 = scmp.eq.s32.totalorder %s19, 1
    %p121 = por %p119, %p120
    %p122 = scmp.ne.s32.totalorder %s113, %s114
    %p123 = scmp.eq.s32.totalorder %s19, 0
    %p124 = por %p122, %p123
    %p125 = scmp.ne.s32.totalorder %s113, %s114
    %p126 = scmp.eq.s32.totalorder %s20, 1
    %p127 = por %p125, %p126
    %p129 = scmp.ne.s32.totalorder %s114, %s128
    %p130 = scmp.eq.s32.totalorder %s20, 0
    %p131 = por %p129, %p130
    %s133 = sadd.s32 %s132, 1
    %p136 = scmp.eq.s32.totalorder %s14, 1
    %p137 = scmp.ne.s32.totalorder %s132, %s134
    %p138 = scmp.eq.s32.totalorder %s14, 0
    %p139 = por %p137, %p138
    %p140 = scmp.ne.s32.totalorder %s132, %s134
    %p141 = scmp.eq.s32.totalorder %s19, 1
    %p142 = por %p140, %p141
    %p143 = scmp.ne.s32.totalorder %s134, %s135
    %p144 = scmp.eq.s32.totalorder %s19, 0
    %p145 = por %p143, %p144
    %p146 = scmp.ne.s32.totalorder %s134, %s135
    %p147 = scmp.eq.s32.totalorder %s20, 1
    %p148 = por %p146, %p147
    %p150 = scmp.ne.s32.totalorder %s135, %s149
    %p151 = scmp.eq.s32.totalorder %s20, 0
    %p152 = por %p150, %p151
    %s153 = ssub.s32 %s14, %s21
    %p154 = scmp.eq.s32.totalorder %s153, 0
    %s156 = sadd.s32 %s155, 1
    %s157 = scalar_select %p154, %s155, %s156
    %p160 = pneg %p154
    %p161 = scmp.eq.s32.totalorder %s14, 1
    %p162 = por %p160, %p161
    %p163 = scmp.ne.s32.totalorder %s155, %s158
    %p164 = scmp.eq.s32.totalorder %s14, 0
    %p165 = por %p163, %p164
    %p166 = scmp.ne.s32.totalorder %s155, %s158
    %p167 = scmp.eq.s32.totalorder %s19, 1
    %p168 = por %p166, %p167
    %p169 = scmp.ne.s32.totalorder %s158, %s159
    %p170 = scmp.eq.s32.totalorder %s19, 0
    %p171 = por %p169, %p170
    %p172 = scmp.ne.s32.totalorder %s158, %s159
    %p173 = scmp.eq.s32.totalorder %s20, 1
    %p174 = por %p172, %p173
    %p176 = scmp.ne.s32.totalorder %s159, %s175
    %p177 = scmp.eq.s32.totalorder %s20, 0
    %p178 = por %p176, %p177
    %s179 = ssub.s32 %s14, %s21
    %p180 = scmp.eq.s32.totalorder %s179, 0
    %s182 = sadd.s32 %s181, 1
    %s183 = scalar_select %p180, %s181, %s182
    %p186 = pneg %p180
    %p187 = scmp.eq.s32.totalorder %s14, 1
    %p188 = por %p186, %p187
    %p189 = scmp.ne.s32.totalorder %s181, %s184
    %p190 = scmp.eq.s32.totalorder %s14, 0
    %p191 = por %p189, %p190
    %p192 = scmp.ne.s32.totalorder %s181, %s184
    %p193 = scmp.eq.s32.totalorder %s19, 1
    %p194 = por %p192, %p193
    %p195 = scmp.ne.s32.totalorder %s184, %s185
    %p196 = scmp.eq.s32.totalorder %s19, 0
    %p197 = por %p195, %p196
    %p198 = scmp.ne.s32.totalorder %s184, %s185
    %p199 = scmp.eq.s32.totalorder %s20, 1
    %p200 = por %p198, %p199
    %p202 = scmp.ne.s32.totalorder %s185, %s201
    %p203 = scmp.eq.s32.totalorder %s20, 0
    %p204 = por %p202, %p203
    %p205 = scmp.le.s32.totalorder 1, %s14
    %p206 = scmp.lt.s32.totalorder %s14, 3
    %p207 = pnand %p205, %p206
    %p208 = pneg %p207
    // Predicated region
    $region9: #{model_distill_forward.1} parent=5 // pred_check
      _
    $region10: #{model_distill_forward.1} parent=5 // pred_check_branch
      %210 = sbr.rel (%p207) target = $region12
    $region11: #{model_distill_forward.1} parent=5 // pred_region
      %s211 = ssub.s32 %s14, 1
      // Predicated region
      $region13: #{model_distill_forward.1} parent=11 // pred_check
        %p212 = pneg %p61
      $region14: #{model_distill_forward.1} parent=11 // pred_check_branch
        %214 = sbr.rel (%p212) target = $region16
      $region15: #{model_distill_forward.1} parent=11 // pred_region
        _
      $region16: #{model_distill_forward.1} parent=11 // pred_fallthru
        _
      // Predicated region
      $region17: #{model_distill_forward.1} parent=11 // pred_check
        %p215 = pneg %p82
      $region18: #{model_distill_forward.1} parent=11 // pred_check_branch
        %217 = sbr.rel (%p215) target = $region20
      $region19: #{model_distill_forward.1} parent=11 // pred_region
        _
      $region20: #{model_distill_forward.1} parent=11 // pred_fallthru
        _
      // Predicated region
      $region21: #{model_distill_forward.1} parent=11 // pred_check
        %p218 = pneg %p103
      $region22: #{model_distill_forward.1} parent=11 // pred_check_branch
        %220 = sbr.rel (%p218) target = $region24
      $region23: #{model_distill_forward.1} parent=11 // pred_region
        _
      $region24: #{model_distill_forward.1} parent=11 // pred_fallthru
        _
      // Predicated region
      $region25: #{model_distill_forward.1} parent=11 // pred_check
        %p221 = pneg %p124
      $region26: #{model_distill_forward.1} parent=11 // pred_check_branch
        %223 = sbr.rel (%p221) target = $region28
      $region27: #{model_distill_forward.1} parent=11 // pred_region
        _
      $region28: #{model_distill_forward.1} parent=11 // pred_fallthru
        _
      // Predicated region
      $region29: #{model_distill_forward.1} parent=11 // pred_check
        %p224 = pneg %p145
      $region30: #{model_distill_forward.1} parent=11 // pred_check_branch
        %226 = sbr.rel (%p224) target = $region32
      $region31: #{model_distill_forward.1} parent=11 // pred_region
        _
      $region32: #{model_distill_forward.1} parent=11 // pred_fallthru
        _
    $region12: #{model_distill_forward.1} parent=5 // pred_fallthru
      _
    %p227 = scmp.lt.s32.totalorder %s14, 2
    // Predicated region
    $region33: #{model_distill_forward.1} parent=5 // pred_check
      %p228 = pneg %p227
    $region34: #{model_distill_forward.1} parent=5 // pred_check_branch
      %230 = sbr.rel (%p228) target = $region36
    $region35: #{model_distill_forward.1} parent=5 // pred_region
      // Predicated region
      $region37: #{model_distill_forward.1} parent=35 // pred_check
        %p231 = pneg %p34
      $region38: #{model_distill_forward.1} parent=35 // pred_check_branch
        %233 = sbr.rel (%p231) target = $region40
      $region39: #{model_distill_forward.1} parent=35 // pred_region
        %s234 = smul.u32 32, %s14
        %p235 = scmp.lt.s32.totalorder %s234, 63
        %s236 = scalar_select %p235, %s234, 63
        %s237 = smul.addr %s236, 4
        %s238 = scalar_lea.vmem %s0, %s237
        %s239 = smul.u32 32, %s14
      $region40: #{model_distill_forward.1} parent=35 // pred_fallthru
        _
    $region36: #{model_distill_forward.1} parent=5 // pred_fallthru
      _
    %p240 = scmp.le.s32.totalorder 1, %s14
    %p241 = scmp.lt.s32.totalorder %s14, 3
    %p242 = pnand %p240, %p241
    %p243 = pneg %p242
    // Predicated region
    $region41: #{model_distill_forward.1} parent=5 // pred_check
      _
    $region42: #{model_distill_forward.1} parent=5 // pred_check_branch
      %245 = sbr.rel (%p242) target = $region44
    $region43: #{model_distill_forward.1} parent=5 // pred_region
      %s246 = ssub.s32 %s14, 1
      %s247 = smul.u32 32, %s19
      %p248 = scmp.lt.s32.totalorder %s247, 63
      %s249 = scalar_select %p248, %s247, 63
      %s250 = smul.addr %s249, 4
      %s251 = scalar_lea.vmem %s0, %s250
      %p252 = pneg %p40
      %p253 = pneg %p37
      %p254 = pneg %p61
      %p255 = pneg %p58
      %p256 = pneg %p82
      %p257 = pneg %p79
      %p258 = pneg %p103
      %p259 = pneg %p100
      %p260 = pneg %p124
      %p261 = pneg %p121
      %p262 = pneg %p145
      %p263 = pneg %p142
      %p264 = pneg %p171
      %p265 = pneg %p168
      %s266 = smul.u32 32, %s19
      %p267 = scmp.lt.s32.totalorder %s266, 63
      %s268 = scalar_select %p267, %s266, 63
      %s269 = smul.addr %s268, 8
      %s270 = scalar_lea.vmem %s6, %s269
      %p271 = pneg %p197
      %p272 = pneg %p194
      %p273 = scmp.lt.s32.totalorder %s19, 1
      %s274 = scalar_select %p273, %s19, 1
      %s275 = smul.addr %s274, 8
      %s276 = scalar_lea.vmem %s7, %s275
      %s277 = smul.u32 32, %s19
      %p278 = scmp.lt.s32.totalorder %s277, 63
      %s279 = scalar_select %p278, %s277, 63
      %s280 = smul.addr %s279, 4
      %s281 = scalar_lea.vmem %s0, %s280
      %s282 = smul.u32 32, %s19
      %s283 = smul.u32 32, %s19
      %p284 = scmp.lt.s32.totalorder %s283, 63
      %s285 = scalar_select %p284, %s283, 63
      %s286 = smul.addr %s285, 8
      %s287 = scalar_lea.vmem %s6, %s286
      %s288 = smul.u32 32, %s19
      %p289 = scmp.lt.s32.totalorder %s19, 1
      %s290 = scalar_select %p289, %s19, 1
      %s291 = smul.addr %s290, 8
      %s292 = scalar_lea.vmem %s7, %s291
      %v294 = vld [vmem:[%s281] sm:$0xf]
      %v295 = vld [vmem:[%s281 + $0x4] sm:$0xf]
      %v296 = vld [vmem:[%s281 + $0x8] sm:$0xf]
      %v297 = vld [vmem:[%s281 + $0xc] sm:$0xf]
      %v298 = vld [vmem:[%s281 + $0x10] sm:$0xf]
      %v299 = vld [vmem:[%s281 + $0x14] sm:$0xf]
      %v300 = vld [vmem:[%s281 + $0x18] sm:$0xf]
      %v301 = vld [vmem:[%s281 + $0x1c] sm:$0xf]
      %v302 = vld [vmem:[%s281 + $0x20] sm:$0xf]
      %v303 = vld [vmem:[%s281 + $0x24] sm:$0xf]
      %v304 = vld [vmem:[%s281 + $0x28] sm:$0xf]
      %v305 = vld [vmem:[%s281 + $0x2c] sm:$0xf]
      %v306 = vld [vmem:[%s281 + $0x30] sm:$0xf]
      %v307 = vld [vmem:[%s281 + $0x34] sm:$0xf]
      %v308 = vld [vmem:[%s281 + $0x38] sm:$0xf]
      %v309 = vld [vmem:[%s281 + $0x3c] sm:$0xf]
      %v310 = vld [vmem:[%s281 + $0x40] sm:$0xf]
      %v311 = vld [vmem:[%s281 + $0x44] sm:$0xf]
      %v312 = vld [vmem:[%s281 + $0x48] sm:$0xf]
      %v313 = vld [vmem:[%s281 + $0x4c] sm:$0xf]
      %v314 = vld [vmem:[%s281 + $0x50] sm:$0xf]
      %v315 = vld [vmem:[%s281 + $0x54] sm:$0xf]
      %v316 = vld [vmem:[%s281 + $0x58] sm:$0xf]
      %v317 = vld [vmem:[%s281 + $0x5c] sm:$0xf]
      %v318 = vld [vmem:[%s281 + $0x60] sm:$0xf]
      %v319 = vld [vmem:[%s281 + $0x64] sm:$0xf]
      %v320 = vld [vmem:[%s281 + $0x68] sm:$0xf]
      %v321 = vld [vmem:[%s281 + $0x6c] sm:$0xf]
      %v322 = vld [vmem:[%s281 + $0x70] sm:$0xf]
      %v323 = vld [vmem:[%s281 + $0x74] sm:$0xf]
      %v324 = vld [vmem:[%s281 + $0x78] sm:$0xf]
      %v325 = vld [vmem:[%s281 + $0x7c] sm:$0xf]
      %v326 = vld [vmem:[%s1] sm:$0xff]
      %v327 = vld [vmem:[%s1 + $0x8] sm:$0xff]
      %v328 = vld [vmem:[%s1 + $0x10] sm:$0xff]
      %v329 = vld [vmem:[%s1 + $0x18] sm:$0xff]
      %v330 = vld [vmem:[%s1 + $0x20] sm:$0x33]
      %v331 = vld [vmem:[%s2] sm:$0x3]
      %v333 = vlaneseq
      %v334 = vshrl.u32 %v333, 7
      %v335 = vsub.s32 0, %v334
      %v336 = vrot.slane %v331, %v335
      %v337 = vlaneseq
      %v338 = vshrl.u32 %v337, 7
      %v339 = vsub.s32 1, %v338
      %v340 = vrot.slane %v331, %v339
      %v375 = vunpack.c.l.b16 %v294
      %v376 = vunpack.c.l.b16 %v295
      %v377 = vunpack.c.l.b16 %v296
      %v378 = vunpack.c.l.b16 %v297
      %v379 = vunpack.c.l.b16 %v298
      %v380 = vunpack.c.l.b16 %v299
      %v381 = vunpack.c.l.b16 %v300
      %v382 = vunpack.c.l.b16 %v301
      %v383 = vunpack.c.l.b16 %v302
      %v384 = vunpack.c.l.b16 %v303
      %v385 = vunpack.c.l.b16 %v304
      %v386 = vunpack.c.l.b16 %v305
      %v387 = vunpack.c.l.b16 %v306
      %v388 = vunpack.c.l.b16 %v307
      %v389 = vunpack.c.l.b16 %v308
      %v390 = vunpack.c.l.b16 %v309
      %v391 = vunpack.c.l.b16 %v310
      %v392 = vunpack.c.l.b16 %v311
      %v393 = vunpack.c.l.b16 %v312
      %v394 = vunpack.c.l.b16 %v313
      %v395 = vunpack.c.l.b16 %v314
      %v396 = vunpack.c.l.b16 %v315
      %v397 = vunpack.c.l.b16 %v316
      %v398 = vunpack.c.l.b16 %v317
      %v399 = vunpack.c.l.b16 %v318
      %v400 = vunpack.c.l.b16 %v319
      %v401 = vunpack.c.l.b16 %v320
      %v402 = vunpack.c.l.b16 %v321
      %v403 = vunpack.c.l.b16 %v322
      %v404 = vunpack.c.l.b16 %v323
      %v405 = vunpack.c.l.b16 %v324
      %v406 = vunpack.c.l.b16 %v325
      %v407 = vpack.c.b16 %v376, %v375
      %v408 = vpack.c.b16 %v378, %v377
      %v409 = vpack.c.b16 %v380, %v379
      %v410 = vpack.c.b16 %v382, %v381
      %v411 = vpack.c.b16 %v384, %v383
      %v412 = vpack.c.b16 %v386, %v385
      %v413 = vpack.c.b16 %v388, %v387
      %v414 = vpack.c.b16 %v390, %v389
      %v415 = vpack.c.b16 %v392, %v391
      %v416 = vpack.c.b16 %v394, %v393
      %v417 = vpack.c.b16 %v396, %v395
      %v418 = vpack.c.b16 %v398, %v397
      %v419 = vpack.c.b16 %v400, %v399
      %v420 = vpack.c.b16 %v402, %v401
      %v421 = vpack.c.b16 %v404, %v403
      %v422 = vpack.c.b16 %v406, %v405
      %v428 = vunpack.c.l.b16 %v326
      %v429 = vunpack.c.h.b16 %v326
      %v430 = vunpack.c.l.b16 %v327
      %v431 = vunpack.c.h.b16 %v327
      %v432 = vunpack.c.l.b16 %v328
      %v433 = vunpack.c.h.b16 %v328
      %v434 = vunpack.c.l.b16 %v329
      %v435 = vunpack.c.h.b16 %v329
      %v436 = vunpack.c.l.b16 %v330
      %v437 = vunpack.c.h.b16 %v330
      %v438 = vpack.c.b16 %v430, %v428
      %v439 = vpack.c.b16 %v431, %v429
      %v440 = vpack.c.b16 %v434, %v432
      %v441 = vpack.c.b16 %v435, %v433
      %v442 = vpack.c.b16 %v436, %v436
      %v443 = vpack.c.b16 %v437, %v437
      %vm448 = vcmask 293888
      %v450 = vsel %vm448, %v407, 0
      %v453 = vsel %vm448, %v408, 0
      %v456 = vsel %vm448, %v409, 0
      %v459 = vsel %vm448, %v410, 0
      %v462 = vsel %vm448, %v411, 0
      %v465 = vsel %vm448, %v412, 0
      %v468 = vsel %vm448, %v413, 0
      %v471 = vsel %vm448, %v414, 0
      %v474 = vsel %vm448, %v415, 0
      %v477 = vsel %vm448, %v416, 0
      %v480 = vsel %vm448, %v417, 0
      %v483 = vsel %vm448, %v418, 0
      %v486 = vsel %vm448, %v419, 0
      %v489 = vsel %vm448, %v420, 0
      %v492 = vsel %vm448, %v421, 0
      %v495 = vsel %vm448, %v422, 0
      %vm497 = vcmask 1041408
      %v499 = vsel %vm497, %v442, 0
      %v502 = vsel %vm497, %v443, 0
      %504 = vmatprep.subr.bf16.mxu0 %v439
      %505 = vmatpush1.bf16.msra.mxu0 %v438
      %506 = vmatprep.subr.bf16.mxu0 %v441
      %507 = vmatpush1.bf16.msra.mxu0 %v440
      %508 = vmatprep.subr.bf16.mxu0 %v502
      %509 = vmatpush1.bf16.msra.mxu0 %v499
      %510 = vmatprep.subr.bf16.mxu0 0
      %511 = vmatpush1.bf16.msra.mxu0 0
      %512 = vmatprep.subr.bf16.mxu0 0
      %513 = vmatpush1.bf16.msra.mxu0 0
      %514 = vmatprep.subr.bf16.mxu0 0
      %515 = vmatpush1.bf16.msra.mxu0 0
      %516 = vmatprep.subr.bf16.mxu0 0
      %517 = vmatpush1.bf16.msra.mxu0 0
      %518 = vmatprep.subr.bf16.mxu0 0
      %519 = vmatpush1.bf16.msra.mxu0 0
      %520 = vmatprep.subr.bf16.mxu0 0
      %521 = vmatpush1.bf16.msra.mxu0 0
      %522 = vmatprep.subr.bf16.mxu0 0
      %523 = vmatpush1.bf16.msra.mxu0 0
      %524 = vmatprep.subr.bf16.mxu0 0
      %525 = vmatpush1.bf16.msra.mxu0 0
      %526 = vmatprep.subr.bf16.mxu0 0
      %527 = vmatpush1.bf16.msra.mxu0 0
      %528 = vmatprep.subr.bf16.mxu0 0
      %529 = vmatpush1.bf16.msra.mxu0 0
      %530 = vmatprep.subr.bf16.mxu0 0
      %531 = vmatpush1.bf16.msra.mxu0 0
      %532 = vmatprep.subr.bf16.mxu0 0
      %533 = vmatpush1.bf16.msra.mxu0 0
      %534 = vmatprep.subr.bf16.mxu0 0
      %535 = vmatpush1.bf16.msra.mxu0 0
      %536 = vmatprep.mubr.bf16.mxu0 0
      %537 = vmatmul.mubr.bf16.gmra.mrb[0].mxu0 %v450
      %v538 = vpop.f32.mrb[0].mxu0
      %v539 = vadd.f32 %v336, %v538
      %v540 = vpop.f32.mrb[0].mxu0
      %v541 = vadd.f32 %v340, %v540
      %v542 = vpop.f32.mrb[0].mxu0
      %v543 = vadd.f32 %v336, %v542
      %v544 = vpop.f32.mrb[0].mxu0
      %v545 = vadd.f32 %v340, %v544
      %546 = vmatprep.mubr.bf16.mxu0 0
      %547 = vmatmul.mubr.bf16.gmra.mrb[0].mxu0 %v453
      %v548 = vpop.f32.mrb[0].mxu0
      %v549 = vadd.f32 %v336, %v548
      %v550 = vpop.f32.mrb[0].mxu0
      %v551 = vadd.f32 %v340, %v550
      %v552 = vpop.f32.mrb[0].mxu0
      %v553 = vadd.f32 %v336, %v552
      %v554 = vpop.f32.mrb[0].mxu0
      %v555 = vadd.f32 %v340, %v554
      %556 = vmatprep.mubr.bf16.mxu0 0
      %557 = vmatmul.mubr.bf16.gmra.mrb[0].mxu0 %v456
      %v558 = vpop.f32.mrb[0].mxu0
      %v559 = vadd.f32 %v336, %v558
      %v560 = vpop.f32.mrb[0].mxu0
      %v561 = vadd.f32 %v340, %v560
      %v562 = vpop.f32.mrb[0].mxu0
      %v563 = vadd.f32 %v336, %v562
      %v564 = vpop.f32.mrb[0].mxu0
      %v565 = vadd.f32 %v340, %v564
      %566 = vmatprep.mubr.bf16.mxu0 0
      %567 = vmatmul.mubr.bf16.gmra.mrb[0].mxu0 %v459
      %v568 = vpop.f32.mrb[0].mxu0
      %v569 = vadd.f32 %v336, %v568
      %v570 = vpop.f32.mrb[0].mxu0
      %v571 = vadd.f32 %v340, %v570
      %v572 = vpop.f32.mrb[0].mxu0
      %v573 = vadd.f32 %v336, %v572
      %v574 = vpop.f32.mrb[0].mxu0
      %v575 = vadd.f32 %v340, %v574
      %576 = vmatprep.mubr.bf16.mxu0 0
      %577 = vmatmul.mubr.bf16.gmra.mrb[0].mxu0 %v462
      %v578 = vpop.f32.mrb[0].mxu0
      %v579 = vadd.f32 %v336, %v578
      %v580 = vpop.f32.mrb[0].mxu0
      %v581 = vadd.f32 %v340, %v580
      %v582 = vpop.f32.mrb[0].mxu0
      %v583 = vadd.f32 %v336, %v582
      %v584 = vpop.f32.mrb[0].mxu0
      %v585 = vadd.f32 %v340, %v584
      %586 = vmatprep.mubr.bf16.mxu0 0
      %587 = vmatmul.mubr.bf16.gmra.mrb[0].mxu0 %v465
      %v588 = vpop.f32.mrb[0].mxu0
      %v589 = vadd.f32 %v336, %v588
      %v590 = vpop.f32.mrb[0].mxu0
      %v591 = vadd.f32 %v340, %v590
      %v592 = vpop.f32.mrb[0].mxu0
      %v593 = vadd.f32 %v336, %v592
      %v594 = vpop.f32.mrb[0].mxu0
      %v595 = vadd.f32 %v340, %v594
      %596 = vmatprep.mubr.bf16.mxu0 0
      %597 = vmatmul.mubr.bf16.gmra.mrb[0].mxu0 %v468
      %v598 = vpop.f32.mrb[0].mxu0
      %v599 = vadd.f32 %v336, %v598
      %v600 = vpop.f32.mrb[0].mxu0
      %v601 = vadd.f32 %v340, %v600
      %v602 = vpop.f32.mrb[0].mxu0
      %v603 = vadd.f32 %v336, %v602
      %v604 = vpop.f32.mrb[0].mxu0
      %v605 = vadd.f32 %v340, %v604
      %606 = vmatprep.mubr.bf16.mxu0 0
      %607 = vmatmul.mubr.bf16.gmra.mrb[0].mxu0 %v471
      %v608 = vpop.f32.mrb[0].mxu0
      %v609 = vadd.f32 %v336, %v608
      %v610 = vpop.f32.mrb[0].mxu0
      %v611 = vadd.f32 %v340, %v610
      %v612 = vpop.f32.mrb[0].mxu0
      %v613 = vadd.f32 %v336, %v612
      %v614 = vpop.f32.mrb[0].mxu0
      %v615 = vadd.f32 %v340, %v614
      %616 = vmatprep.mubr.bf16.mxu0 0
      %617 = vmatmul.mubr.bf16.gmra.mrb[0].mxu0 %v474
      %v618 = vpop.f32.mrb[0].mxu0
      %v619 = vadd.f32 %v336, %v618
      %v620 = vpop.f32.mrb[0].mxu0
      %v621 = vadd.f32 %v340, %v620
      %v622 = vpop.f32.mrb[0].mxu0
      %v623 = vadd.f32 %v336, %v622
      %v624 = vpop.f32.mrb[0].mxu0
      %v625 = vadd.f32 %v340, %v624
      %626 = vmatprep.mubr.bf16.mxu0 0
      %627 = vmatmul.mubr.bf16.gmra.mrb[0].mxu0 %v477
      %v628 = vpop.f32.mrb[0].mxu0
      %v629 = vadd.f32 %v336, %v628
      %v630 = vpop.f32.mrb[0].mxu0
      %v631 = vadd.f32 %v340, %v630
      %v632 = vpop.f32.mrb[0].mxu0
      %v633 = vadd.f32 %v336, %v632
      %v634 = vpop.f32.mrb[0].mxu0
      %v635 = vadd.f32 %v340, %v634
      %636 = vmatprep.mubr.bf16.mxu0 0
      %637 = vmatmul.mubr.bf16.gmra.mrb[0].mxu0 %v480
      %v638 = vpop.f32.mrb[0].mxu0
      %v639 = vadd.f32 %v336, %v638
      %v640 = vpop.f32.mrb[0].mxu0
      %v641 = vadd.f32 %v340, %v640
      %v642 = vpop.f32.mrb[0].mxu0
      %v643 = vadd.f32 %v336, %v642
      %v644 = vpop.f32.mrb[0].mxu0
      %v645 = vadd.f32 %v340, %v644
      %646 = vmatprep.mubr.bf16.mxu0 0
      %647 = vmatmul.mubr.bf16.gmra.mrb[0].mxu0 %v483
      %v648 = vpop.f32.mrb[0].mxu0
      %v649 = vadd.f32 %v336, %v648
      %v650 = vpop.f32.mrb[0].mxu0
      %v651 = vadd.f32 %v340, %v650
      %v652 = vpop.f32.mrb[0].mxu0
      %v653 = vadd.f32 %v336, %v652
      %v654 = vpop.f32.mrb[0].mxu0
      %v655 = vadd.f32 %v340, %v654
      %656 = vmatprep.mubr.bf16.mxu0 0
      %657 = vmatmul.mubr.bf16.gmra.mrb[0].mxu0 %v486
      %v658 = vpop.f32.mrb[0].mxu0
      %v659 = vadd.f32 %v336, %v658
      %v660 = vpop.f32.mrb[0].mxu0
      %v661 = vadd.f32 %v340, %v660
      %v662 = vpop.f32.mrb[0].mxu0
      %v663 = vadd.f32 %v336, %v662
      %v664 = vpop.f32.mrb[0].mxu0
      %v665 = vadd.f32 %v340, %v664
      %666 = vmatprep.mubr.bf16.mxu0 0
      %667 = vmatmul.mubr.bf16.gmra.mrb[0].mxu0 %v489
      %v668 = vpop.f32.mrb[0].mxu0
      %v669 = vadd.f32 %v336, %v668
      %v670 = vpop.f32.mrb[0].mxu0
      %v671 = vadd.f32 %v340, %v670
      %v672 = vpop.f32.mrb[0].mxu0
      %v673 = vadd.f32 %v336, %v672
      %v674 = vpop.f32.mrb[0].mxu0
      %v675 = vadd.f32 %v340, %v674
      %676 = vmatprep.mubr.bf16.mxu0 0
      %677 = vmatmul.mubr.bf16.gmra.mrb[0].mxu0 %v492
      %v678 = vpop.f32.mrb[0].mxu0
      %v679 = vadd.f32 %v336, %v678
      %v680 = vpop.f32.mrb[0].mxu0
      %v681 = vadd.f32 %v340, %v680
      %v682 = vpop.f32.mrb[0].mxu0
      %v683 = vadd.f32 %v336, %v682
      %v684 = vpop.f32.mrb[0].mxu0
      %v685 = vadd.f32 %v340, %v684
      %686 = vmatprep.mubr.bf16.mxu0 0
      %687 = vmatmul.mubr.bf16.gmra.mrb[0].mxu0 %v495
      %v688 = vpop.f32.mrb[0].mxu0
      %v689 = vadd.f32 %v336, %v688
      %v690 = vpop.f32.mrb[0].mxu0
      %v691 = vadd.f32 %v340, %v690
      %v692 = vpop.f32.mrb[0].mxu0
      %v693 = vadd.f32 %v336, %v692
      %v694 = vpop.f32.mrb[0].mxu0
      %v695 = vadd.f32 %v340, %v694
      %696 = vdwg.mxu0
      %v697 = vmax.f32 %v539, 0.0
      %v698 = vmax.f32 %v541, 0.0
      %v699 = vmax.f32 %v543, 0.0
      %v700 = vmax.f32 %v545, 0.0
      %v701 = vmax.f32 %v549, 0.0
      %v702 = vmax.f32 %v551, 0.0
      %v703 = vmax.f32 %v553, 0.0
      %v704 = vmax.f32 %v555, 0.0
      %v705 = vmax.f32 %v559, 0.0
      %v706 = vmax.f32 %v561, 0.0
      %v707 = vmax.f32 %v563, 0.0
      %v708 = vmax.f32 %v565, 0.0
      %v709 = vmax.f32 %v569, 0.0
      %v710 = vmax.f32 %v571, 0.0
      %v711 = vmax.f32 %v573, 0.0
      %v712 = vmax.f32 %v575, 0.0
      %v713 = vmax.f32 %v579, 0.0
      %v714 = vmax.f32 %v581, 0.0
      %v715 = vmax.f32 %v583, 0.0
      %v716 = vmax.f32 %v585, 0.0
      %v717 = vmax.f32 %v589, 0.0
      %v718 = vmax.f32 %v591, 0.0
      %v719 = vmax.f32 %v593, 0.0
      %v720 = vmax.f32 %v595, 0.0
      %v721 = vmax.f32 %v599, 0.0
      %v722 = vmax.f32 %v601, 0.0
      %v723 = vmax.f32 %v603, 0.0
      %v724 = vmax.f32 %v605, 0.0
      %v725 = vmax.f32 %v609, 0.0
      %v726 = vmax.f32 %v611, 0.0
      %v727 = vmax.f32 %v613, 0.0
      %v728 = vmax.f32 %v615, 0.0
      %v729 = vmax.f32 %v619, 0.0
      %v730 = vmax.f32 %v621, 0.0
      %v731 = vmax.f32 %v623, 0.0
      %v732 = vmax.f32 %v625, 0.0
      %v733 = vmax.f32 %v629, 0.0
      %v734 = vmax.f32 %v631, 0.0
      %v735 = vmax.f32 %v633, 0.0
      %v736 = vmax.f32 %v635, 0.0
      %v737 = vmax.f32 %v639, 0.0
      %v738 = vmax.f32 %v641, 0.0
      %v739 = vmax.f32 %v643, 0.0
      %v740 = vmax.f32 %v645, 0.0
      %v741 = vmax.f32 %v649, 0.0
      %v742 = vmax.f32 %v651, 0.0
      %v743 = vmax.f32 %v653, 0.0
      %v744 = vmax.f32 %v655, 0.0
      %v745 = vmax.f32 %v659, 0.0
      %v746 = vmax.f32 %v661, 0.0
      %v747 = vmax.f32 %v663, 0.0
      %v748 = vmax.f32 %v665, 0.0
      %v749 = vmax.f32 %v669, 0.0
      %v750 = vmax.f32 %v671, 0.0
      %v751 = vmax.f32 %v673, 0.0
      %v752 = vmax.f32 %v675, 0.0
      %v753 = vmax.f32 %v679, 0.0
      %v754 = vmax.f32 %v681, 0.0
      %v755 = vmax.f32 %v683, 0.0
      %v756 = vmax.f32 %v685, 0.0
      %v757 = vmax.f32 %v689, 0.0
      %v758 = vmax.f32 %v691, 0.0
      %v759 = vmax.f32 %v693, 0.0
      %v760 = vmax.f32 %v695, 0.0
      %v761 = vpack.c.bf16 %v699, %v697
      %v762 = vpack.c.bf16 %v700, %v698
      %v763 = vpack.c.bf16 %v703, %v701
      %v764 = vpack.c.bf16 %v704, %v702
      %v765 = vpack.c.bf16 %v707, %v705
      %v766 = vpack.c.bf16 %v708, %v706
      %v767 = vpack.c.bf16 %v711, %v709
      %v768 = vpack.c.bf16 %v712, %v710
      %v769 = vpack.c.bf16 %v715, %v713
      %v770 = vpack.c.bf16 %v716, %v714
      %v771 = vpack.c.bf16 %v719, %v717
      %v772 = vpack.c.bf16 %v720, %v718
      %v773 = vpack.c.bf16 %v723, %v721
      %v774 = vpack.c.bf16 %v724, %v722
      %v775 = vpack.c.bf16 %v727, %v725
      %v776 = vpack.c.bf16 %v728, %v726
      %v777 = vpack.c.bf16 %v731, %v729
      %v778 = vpack.c.bf16 %v732, %v730
      %v779 = vpack.c.bf16 %v735, %v733
      %v780 = vpack.c.bf16 %v736, %v734
      %v781 = vpack.c.bf16 %v739, %v737
      %v782 = vpack.c.bf16 %v740, %v738
      %v783 = vpack.c.bf16 %v743, %v741
      %v784 = vpack.c.bf16 %v744, %v742
      %v785 = vpack.c.bf16 %v747, %v745
      %v786 = vpack.c.bf16 %v748, %v746
      %v787 = vpack.c.bf16 %v751, %v749
      %v788 = vpack.c.bf16 %v752, %v750
      %v789 = vpack.c.bf16 %v755, %v753
      %v790 = vpack.c.bf16 %v756, %v754
      %v791 = vpack.c.bf16 %v759, %v757
      %v792 = vpack.c.bf16 %v760, %v758
      %v793 = vld [vmem:[%s3] sm:$0xff]
      %v794 = vld [vmem:[%s3 + $0x8] sm:$0xff]
      %v795 = vld [vmem:[%s3 + $0x10] sm:$0xff]
      %v796 = vld [vmem:[%s3 + $0x18] sm:$0xff]
      %v797 = vld [vmem:[%s3 + $0x20] sm:$0xff]
      %v798 = vld [vmem:[%s3 + $0x28] sm:$0xff]
      %v799 = vld [vmem:[%s3 + $0x30] sm:$0xff]
      %v800 = vld [vmem:[%s3 + $0x38] sm:$0xff]
      %v801 = vld [vmem:[%s3 + $0x40] sm:$0xff]
      %v802 = vld [vmem:[%s3 + $0x48] sm:$0xff]
      %v803 = vld [vmem:[%s3 + $0x50] sm:$0xff]
      %v804 = vld [vmem:[%s3 + $0x58] sm:$0xff]
      %v805 = vld [vmem:[%s3 + $0x60] sm:$0xff]
      %v806 = vld [vmem:[%s3 + $0x68] sm:$0xff]
      %v807 = vld [vmem:[%s3 + $0x70] sm:$0xff]
      %v808 = vld [vmem:[%s3 + $0x78] sm:$0xff]
      %v809 = vld [vmem:[%s3 + $0x80] sm:$0xff]
      %v810 = vld [vmem:[%s3 + $0x88] sm:$0xff]
      %v811 = vld [vmem:[%s3 + $0x90] sm:$0xff]
      %v812 = vld [vmem:[%s3 + $0x98] sm:$0xff]
      %v813 = vld [vmem:[%s3 + $0xa0] sm:$0xff]
      %v814 = vld [vmem:[%s3 + $0xa8] sm:$0xff]
      %v815 = vld [vmem:[%s3 + $0xb0] sm:$0xff]
      %v816 = vld [vmem:[%s3 + $0xb8] sm:$0xff]
      %v817 = vld [vmem:[%s3 + $0xc0] sm:$0xff]
      %v818 = vld [vmem:[%s3 + $0xc8] sm:$0xff]
      %v819 = vld [vmem:[%s3 + $0xd0] sm:$0xff]
      %v820 = vld [vmem:[%s3 + $0xd8] sm:$0xff]
      %v821 = vld [vmem:[%s3 + $0xe0] sm:$0xff]
      %v822 = vld [vmem:[%s3 + $0xe8] sm:$0xff]
      %v823 = vld [vmem:[%s3 + $0xf0] sm:$0xff]
      %v824 = vld [vmem:[%s3 + $0xf8] sm:$0xff]
      %v825 = vld [vmem:[%s4] sm:$0x3]
      %v827 = vlaneseq
      %v828 = vshrl.u32 %v827, 7
      %v829 = vsub.s32 0, %v828
      %v830 = vrot.slane %v825, %v829
      %v831 = vlaneseq
      %v832 = vshrl.u32 %v831, 7
      %v833 = vsub.s32 1, %v832
      %v834 = vrot.slane %v825, %v833
      %v869 = vunpack.c.l.b16 %v793
      %v870 = vunpack.c.h.b16 %v793
      %v871 = vunpack.c.l.b16 %v794
      %v872 = vunpack.c.h.b16 %v794
      %v873 = vunpack.c.l.b16 %v795
      %v874 = vunpack.c.h.b16 %v795
      %v875 = vunpack.c.l.b16 %v796
      %v876 = vunpack.c.h.b16 %v796
      %v877 = vunpack.c.l.b16 %v797
      %v878 = vunpack.c.h.b16 %v797
      %v879 = vunpack.c.l.b16 %v798
      %v880 = vunpack.c.h.b16 %v798
      %v881 = vunpack.c.l.b16 %v799
      %v882 = vunpack.c.h.b16 %v799
      %v883 = vunpack.c.l.b16 %v800
      %v884 = vunpack.c.h.b16 %v800
      %v885 = vunpack.c.l.b16 %v801
      %v886 = vunpack.c.h.b16 %v801
      %v887 = vunpack.c.l.b16 %v802
      %v888 = vunpack.c.h.b16 %v802
      %v889 = vunpack.c.l.b16 %v803
      %v890 = vunpack.c.h.b16 %v803
      %v891 = vunpack.c.l.b16 %v804
      %v892 = vunpack.c.h.b16 %v804
      %v893 = vunpack.c.l.b16 %v805
      %v894 = vunpack.c.h.b16 %v805
      %v895 = vunpack.c.l.b16 %v806
      %v896 = vunpack.c.h.b16 %v806
      %v897 = vunpack.c.l.b16 %v807
      %v898 = vunpack.c.h.b16 %v807
      %v899 = vunpack.c.l.b16 %v808
      %v900 = vunpack.c.h.b16 %v808
      %v901 = vunpack.c.l.b16 %v809
      %v902 = vunpack.c.h.b16 %v809
      %v903 = vunpack.c.l.b16 %v810
      %v904 = vunpack.c.h.b16 %v810
      %v905 = vunpack.c.l.b16 %v811
      %v906 = vunpack.c.h.b16 %v811
      %v907 = vunpack.c.l.b16 %v812
      %v908 = vunpack.c.h.b16 %v812
      %v909 = vunpack.c.l.b16 %v813
      %v910 = vunpack.c.h.b16 %v813
      %v911 = vunpack.c.l.b16 %v814
      %v912 = vunpack.c.h.b16 %v814
      %v913 = vunpack.c.l.b16 %v815
      %v914 = vunpack.c.h.b16 %v815
      %v915 = vunpack.c.l.b16 %v816
      %v916 = vunpack.c.h.b16 %v816
      %v917 = vunpack.c.l.b16 %v817
      %v918 = vunpack.c.h.b16 %v817
      %v919 = vunpack.c.l.b16 %v818
      %v920 = vunpack.c.h.b16 %v818
      %v921 = vunpack.c.l.b16 %v819
      %v922 = vunpack.c.h.b16 %v819
      %v923 = vunpack.c.l.b16 %v820
      %v924 = vunpack.c.h.b16 %v820
      %v925 = vunpack.c.l.b16 %v821
      %v926 = vunpack.c.h.b16 %v821
      %v927 = vunpack.c.l.b16 %v822
      %v928 = vunpack.c.h.b16 %v822
      %v929 = vunpack.c.l.b16 %v823
      %v930 = vunpack.c.h.b16 %v823
      %v931 = vunpack.c.l.b16 %v824
      %v932 = vunpack.c.h.b16 %v824
      %v933 = vpack.c.b16 %v871, %v869
      %v934 = vpack.c.b16 %v872, %v870
      %v935 = vpack.c.b16 %v875, %v873
      %v936 = vpack.c.b16 %v876, %v874
      %v937 = vpack.c.b16 %v879, %v877
      %v938 = vpack.c.b16 %v880, %v878
      %v939 = vpack.c.b16 %v883, %v881
      %v940 = vpack.c.b16 %v884, %v882
      %v941 = vpack.c.b16 %v887, %v885
      %v942 = vpack.c.b16 %v888, %v886
      %v943 = vpack.c.b16 %v891, %v889
      %v944 = vpack.c.b16 %v892, %v890
      %v945 = vpack.c.b16 %v895, %v893
      %v946 = vpack.c.b16 %v896, %v894
      %v947 = vpack.c.b16 %v899, %v897
      %v948 = vpack.c.b16 %v900, %v898
      %v949 = vpack.c.b16 %v903, %v901
      %v950 = vpack.c.b16 %v904, %v902
      %v951 = vpack.c.b16 %v907, %v905
      %v952 = vpack.c.b16 %v908, %v906
      %v953 = vpack.c.b16 %v911, %v909
      %v954 = vpack.c.b16 %v912, %v910
      %v955 = vpack.c.b16 %v915, %v913
      %v956 = vpack.c.b16 %v916, %v914
      %v957 = vpack.c.b16 %v919, %v917
      %v958 = vpack.c.b16 %v920, %v918
      %v959 = vpack.c.b16 %v923, %v921
      %v960 = vpack.c.b16 %v924, %v922
      %v961 = vpack.c.b16 %v927, %v925
      %v962 = vpack.c.b16 %v928, %v926
      %v963 = vpack.c.b16 %v931, %v929
      %v964 = vpack.c.b16 %v932, %v930
      %997 = vmatprep.subr.bf16.mxu0 %v934
      %998 = vmatpush1.bf16.msra.mxu0 %v933
      %999 = vmatprep.subr.bf16.mxu0 %v936
      %1000 = vmatpush1.bf16.msra.mxu0 %v935
      %1001 = vmatprep.subr.bf16.mxu0 %v938
      %1002 = vmatpush1.bf16.msra.mxu0 %v937
      %1003 = vmatprep.subr.bf16.mxu0 %v940
      %1004 = vmatpush1.bf16.msra.mxu0 %v939
      %1005 = vmatprep.subr.bf16.mxu0 %v942
      %1006 = vmatpush1.bf16.msra.mxu0 %v941
      %1007 = vmatprep.subr.bf16.mxu0 %v944
      %1008 = vmatpush1.bf16.msra.mxu0 %v943
      %1009 = vmatprep.subr.bf16.mxu0 %v946
      %1010 = vmatpush1.bf16.msra.mxu0 %v945
      %1011 = vmatprep.subr.bf16.mxu0 %v948
      %1012 = vmatpush1.bf16.msra.mxu0 %v947
      %1013 = vmatprep.subr.bf16.mxu0 %v950
      %1014 = vmatpush1.bf16.msra.mxu0 %v949
      %1015 = vmatprep.subr.bf16.mxu0 %v952
      %1016 = vmatpush1.bf16.msra.mxu0 %v951
      %1017 = vmatprep.subr.bf16.mxu0 %v954
      %1018 = vmatpush1.bf16.msra.mxu0 %v953
      %1019 = vmatprep.subr.bf16.mxu0 %v956
      %1020 = vmatpush1.bf16.msra.mxu0 %v955
      %1021 = vmatprep.subr.bf16.mxu0 %v958
      %1022 = vmatpush1.bf16.msra.mxu0 %v957
      %1023 = vmatprep.subr.bf16.mxu0 %v960
      %1024 = vmatpush1.bf16.msra.mxu0 %v959
      %1025 = vmatprep.subr.bf16.mxu0 %v962
      %1026 = vmatpush1.bf16.msra.mxu0 %v961
      %1027 = vmatprep.subr.bf16.mxu0 %v964
      %1028 = vmatpush1.bf16.msra.mxu0 %v963
      %1029 = vmatprep.mubr.bf16.mxu0 %v762
      %1030 = vmatmul.mubr.bf16.gmra.mrb[0].mxu0 %v761
      %v1031 = vpop.f32.mrb[0].mxu0
      %v1032 = vadd.f32 %v830, %v1031
      %v1033 = vpop.f32.mrb[0].mxu0
      %v1034 = vadd.f32 %v834, %v1033
      %v1035 = vpop.f32.mrb[0].mxu0
      %v1036 = vadd.f32 %v830, %v1035
      %v1037 = vpop.f32.mrb[0].mxu0
      %v1038 = vadd.f32 %v834, %v1037
      %1039 = vmatprep.mubr.bf16.mxu0 %v764
      %1040 = vmatmul.mubr.bf16.gmra.mrb[0].mxu0 %v763
      %v1041 = vpop.f32.mrb[0].mxu0
      %v1042 = vadd.f32 %v830, %v1041
      %v1043 = vpop.f32.mrb[0].mxu0
      %v1044 = vadd.f32 %v834, %v1043
      %v1045 = vpop.f32.mrb[0].mxu0
      %v1046 = vadd.f32 %v830, %v1045
      %v1047 = vpop.f32.mrb[0].mxu0
      %v1048 = vadd.f32 %v834, %v1047
      %1049 = vmatprep.mubr.bf16.mxu0 %v766
      %1050 = vmatmul.mubr.bf16.gmra.mrb[0].mxu0 %v765
      %v1051 = vpop.f32.mrb[0].mxu0
      %v1052 = vadd.f32 %v830, %v1051
      %v1053 = vpop.f32.mrb[0].mxu0
      %v1054 = vadd.f32 %v834, %v1053
      %v1055 = vpop.f32.mrb[0].mxu0
      %v1056 = vadd.f32 %v830, %v1055
      %v1057 = vpop.f32.mrb[0].mxu0
      %v1058 = vadd.f32 %v834, %v1057
      %1059 = vmatprep.mubr.bf16.mxu0 %v768
      %1060 = vmatmul.mubr.bf16.gmra.mrb[0].mxu0 %v767
      %v1061 = vpop.f32.mrb[0].mxu0
      %v1062 = vadd.f32 %v830, %v1061
      %v1063 = vpop.f32.mrb[0].mxu0
      %v1064 = vadd.f32 %v834, %v1063
      %v1065 = vpop.f32.mrb[0].mxu0
      %v1066 = vadd.f32 %v830, %v1065
      %v1067 = vpop.f32.mrb[0].mxu0
      %v1068 = vadd.f32 %v834, %v1067
      %1069 = vmatprep.mubr.bf16.mxu0 %v770
      %1070 = vmatmul.mubr.bf16.gmra.mrb[0].mxu0 %v769
      %v1071 = vpop.f32.mrb[0].mxu0
      %v1072 = vadd.f32 %v830, %v1071
      %v1073 = vpop.f32.mrb[0].mxu0
      %v1074 = vadd.f32 %v834, %v1073
      %v1075 = vpop.f32.mrb[0].mxu0
      %v1076 = vadd.f32 %v830, %v1075
      %v1077 = vpop.f32.mrb[0].mxu0
      %v1078 = vadd.f32 %v834, %v1077
      %1079 = vmatprep.mubr.bf16.mxu0 %v772
      %1080 = vmatmul.mubr.bf16.gmra.mrb[0].mxu0 %v771
      %v1081 = vpop.f32.mrb[0].mxu0
      %v1082 = vadd.f32 %v830, %v1081
      %v1083 = vpop.f32.mrb[0].mxu0
      %v1084 = vadd.f32 %v834, %v1083
      %v1085 = vpop.f32.mrb[0].mxu0
      %v1086 = vadd.f32 %v830, %v1085
      %v1087 = vpop.f32.mrb[0].mxu0
      %v1088 = vadd.f32 %v834, %v1087
      %1089 = vmatprep.mubr.bf16.mxu0 %v774
      %1090 = vmatmul.mubr.bf16.gmra.mrb[0].mxu0 %v773
      %v1091 = vpop.f32.mrb[0].mxu0
      %v1092 = vadd.f32 %v830, %v1091
      %v1093 = vpop.f32.mrb[0].mxu0
      %v1094 = vadd.f32 %v834, %v1093
      %v1095 = vpop.f32.mrb[0].mxu0
      %v1096 = vadd.f32 %v830, %v1095
      %v1097 = vpop.f32.mrb[0].mxu0
      %v1098 = vadd.f32 %v834, %v1097
      %1099 = vmatprep.mubr.bf16.mxu0 %v776
      %1100 = vmatmul.mubr.bf16.gmra.mrb[0].mxu0 %v775
      %v1101 = vpop.f32.mrb[0].mxu0
      %v1102 = vadd.f32 %v830, %v1101
      %v1103 = vpop.f32.mrb[0].mxu0
      %v1104 = vadd.f32 %v834, %v1103
      %v1105 = vpop.f32.mrb[0].mxu0
      %v1106 = vadd.f32 %v830, %v1105
      %v1107 = vpop.f32.mrb[0].mxu0
      %v1108 = vadd.f32 %v834, %v1107
      %1109 = vmatprep.mubr.bf16.mxu0 %v778
      %1110 = vmatmul.mubr.bf16.gmra.mrb[0].mxu0 %v777
      %v1111 = vpop.f32.mrb[0].mxu0
      %v1112 = vadd.f32 %v830, %v1111
      %v1113 = vpop.f32.mrb[0].mxu0
      %v1114 = vadd.f32 %v834, %v1113
      %v1115 = vpop.f32.mrb[0].mxu0
      %v1116 = vadd.f32 %v830, %v1115
      %v1117 = vpop.f32.mrb[0].mxu0
      %v1118 = vadd.f32 %v834, %v1117
      %1119 = vmatprep.mubr.bf16.mxu0 %v780
      %1120 = vmatmul.mubr.bf16.gmra.mrb[0].mxu0 %v779
      %v1121 = vpop.f32.mrb[0].mxu0
      %v1122 = vadd.f32 %v830, %v1121
      %v1123 = vpop.f32.mrb[0].mxu0
      %v1124 = vadd.f32 %v834, %v1123
      %v1125 = vpop.f32.mrb[0].mxu0
      %v1126 = vadd.f32 %v830, %v1125
      %v1127 = vpop.f32.mrb[0].mxu0
      %v1128 = vadd.f32 %v834, %v1127
      %1129 = vmatprep.mubr.bf16.mxu0 %v782
      %1130 = vmatmul.mubr.bf16.gmra.mrb[0].mxu0 %v781
      %v1131 = vpop.f32.mrb[0].mxu0
      %v1132 = vadd.f32 %v830, %v1131
      %v1133 = vpop.f32.mrb[0].mxu0
      %v1134 = vadd.f32 %v834, %v1133
      %v1135 = vpop.f32.mrb[0].mxu0
      %v1136 = vadd.f32 %v830, %v1135
      %v1137 = vpop.f32.mrb[0].mxu0
      %v1138 = vadd.f32 %v834, %v1137
      %1139 = vmatprep.mubr.bf16.mxu0 %v784
      %1140 = vmatmul.mubr.bf16.gmra.mrb[0].mxu0 %v783
      %v1141 = vpop.f32.mrb[0].mxu0
      %v1142 = vadd.f32 %v830, %v1141
      %v1143 = vpop.f32.mrb[0].mxu0
      %v1144 = vadd.f32 %v834, %v1143
      %v1145 = vpop.f32.mrb[0].mxu0
      %v1146 = vadd.f32 %v830, %v1145
      %v1147 = vpop.f32.mrb[0].mxu0
      %v1148 = vadd.f32 %v834, %v1147
      %1149 = vmatprep.mubr.bf16.mxu0 %v786
      %1150 = vmatmul.mubr.bf16.gmra.mrb[0].mxu0 %v785
      %v1151 = vpop.f32.mrb[0].mxu0
      %v1152 = vadd.f32 %v830, %v1151
      %v1153 = vpop.f32.mrb[0].mxu0
      %v1154 = vadd.f32 %v834, %v1153
      %v1155 = vpop.f32.mrb[0].mxu0
      %v1156 = vadd.f32 %v830, %v1155
      %v1157 = vpop.f32.mrb[0].mxu0
      %v1158 = vadd.f32 %v834, %v1157
      %1159 = vmatprep.mubr.bf16.mxu0 %v788
      %1160 = vmatmul.mubr.bf16.gmra.mrb[0].mxu0 %v787
      %v1161 = vpop.f32.mrb[0].mxu0
      %v1162 = vadd.f32 %v830, %v1161
      %v1163 = vpop.f32.mrb[0].mxu0
      %v1164 = vadd.f32 %v834, %v1163
      %v1165 = vpop.f32.mrb[0].mxu0
      %v1166 = vadd.f32 %v830, %v1165
      %v1167 = vpop.f32.mrb[0].mxu0
      %v1168 = vadd.f32 %v834, %v1167
      %1169 = vmatprep.mubr.bf16.mxu0 %v790
      %1170 = vmatmul.mubr.bf16.gmra.mrb[0].mxu0 %v789
      %v1171 = vpop.f32.mrb[0].mxu0
      %v1172 = vadd.f32 %v830, %v1171
      %v1173 = vpop.f32.mrb[0].mxu0
      %v1174 = vadd.f32 %v834, %v1173
      %v1175 = vpop.f32.mrb[0].mxu0
      %v1176 = vadd.f32 %v830, %v1175
      %v1177 = vpop.f32.mrb[0].mxu0
      %v1178 = vadd.f32 %v834, %v1177
      %1179 = vmatprep.mubr.bf16.mxu0 %v792
      %1180 = vmatmul.mubr.bf16.gmra.mrb[0].mxu0 %v791
      %v1181 = vpop.f32.mrb[0].mxu0
      %v1182 = vadd.f32 %v830, %v1181
      %v1183 = vpop.f32.mrb[0].mxu0
      %v1184 = vadd.f32 %v834, %v1183
      %v1185 = vpop.f32.mrb[0].mxu0
      %v1186 = vadd.f32 %v830, %v1185
      %v1187 = vpop.f32.mrb[0].mxu0
      %v1188 = vadd.f32 %v834, %v1187
      %1189 = vdwg.mxu0
      %1190 = vst [vmem:[%s287] sm:$0xff] %v1034
      %1191 = vst [vmem:[%s287 + $0x8] sm:$0xff] %v1038
      %1192 = vst [vmem:[%s287 + $0x10] sm:$0xff] %v1044
      %1193 = vst [vmem:[%s287 + $0x18] sm:$0xff] %v1048
      %1194 = vst [vmem:[%s287 + $0x20] sm:$0xff] %v1054
      %1195 = vst [vmem:[%s287 + $0x28] sm:$0xff] %v1058
      %1196 = vst [vmem:[%s287 + $0x30] sm:$0xff] %v1064
      %1197 = vst [vmem:[%s287 + $0x38] sm:$0xff] %v1068
      %1198 = vst [vmem:[%s287 + $0x40] sm:$0xff] %v1074
      %1199 = vst [vmem:[%s287 + $0x48] sm:$0xff] %v1078
      %1200 = vst [vmem:[%s287 + $0x50] sm:$0xff] %v1084
      %1201 = vst [vmem:[%s287 + $0x58] sm:$0xff] %v1088
      %1202 = vst [vmem:[%s287 + $0x60] sm:$0xff] %v1094
      %1203 = vst [vmem:[%s287 + $0x68] sm:$0xff] %v1098
      %1204 = vst [vmem:[%s287 + $0x70] sm:$0xff] %v1104
      %1205 = vst [vmem:[%s287 + $0x78] sm:$0xff] %v1108
      %1206 = vst [vmem:[%s287 + $0x80] sm:$0xff] %v1114
      %1207 = vst [vmem:[%s287 + $0x88] sm:$0xff] %v1118
      %1208 = vst [vmem:[%s287 + $0x90] sm:$0xff] %v1124
      %1209 = vst [vmem:[%s287 + $0x98] sm:$0xff] %v1128
      %1210 = vst [vmem:[%s287 + $0xa0] sm:$0xff] %v1134
      %1211 = vst [vmem:[%s287 + $0xa8] sm:$0xff] %v1138
      %1212 = vst [vmem:[%s287 + $0xb0] sm:$0xff] %v1144
      %1213 = vst [vmem:[%s287 + $0xb8] sm:$0xff] %v1148
      %1214 = vst [vmem:[%s287 + $0xc0] sm:$0xff] %v1154
      %1215 = vst [vmem:[%s287 + $0xc8] sm:$0xff] %v1158
      %1216 = vst [vmem:[%s287 + $0xd0] sm:$0xff] %v1164
      %1217 = vst [vmem:[%s287 + $0xd8] sm:$0xff] %v1168
      %1218 = vst [vmem:[%s287 + $0xe0] sm:$0xff] %v1174
      %1219 = vst [vmem:[%s287 + $0xe8] sm:$0xff] %v1178
      %1220 = vst [vmem:[%s287 + $0xf0] sm:$0xff] %v1184
      %1221 = vst [vmem:[%s287 + $0xf8] sm:$0xff] %v1188
      %v1222 = vsub.f32 %v1032, %v1034
      %v1223 = vsub.f32 %v1036, %v1038
      %v1224 = vsub.f32 %v1042, %v1044
      %v1225 = vsub.f32 %v1046, %v1048
      %v1226 = vsub.f32 %v1052, %v1054
      %v1227 = vsub.f32 %v1056, %v1058
      %v1228 = vsub.f32 %v1062, %v1064
      %v1229 = vsub.f32 %v1066, %v1068
      %v1230 = vsub.f32 %v1072, %v1074
      %v1231 = vsub.f32 %v1076, %v1078
      %v1232 = vsub.f32 %v1082, %v1084
      %v1233 = vsub.f32 %v1086, %v1088
      %v1234 = vsub.f32 %v1092, %v1094
      %v1235 = vsub.f32 %v1096, %v1098
      %v1236 = vsub.f32 %v1102, %v1104
      %v1237 = vsub.f32 %v1106, %v1108
      %v1238 = vsub.f32 %v1112, %v1114
      %v1239 = vsub.f32 %v1116, %v1118
      %v1240 = vsub.f32 %v1122, %v1124
      %v1241 = vsub.f32 %v1126, %v1128
      %v1242 = vsub.f32 %v1132, %v1134
      %v1243 = vsub.f32 %v1136, %v1138
      %v1244 = vsub.f32 %v1142, %v1144
      %v1245 = vsub.f32 %v1146, %v1148
      %v1246 = vsub.f32 %v1152, %v1154
      %v1247 = vsub.f32 %v1156, %v1158
      %v1248 = vsub.f32 %v1162, %v1164
      %v1249 = vsub.f32 %v1166, %v1168
      %v1250 = vsub.f32 %v1172, %v1174
      %v1251 = vsub.f32 %v1176, %v1178
      %v1252 = vsub.f32 %v1182, %v1184
      %v1253 = vsub.f32 %v1186, %v1188
      %v1254 = vmul.f32 %v1222, %v1222
      %v1255 = vmul.f32 %v1223, %v1223
      %v1256 = vmul.f32 %v1224, %v1224
      %v1257 = vmul.f32 %v1225, %v1225
      %v1258 = vmul.f32 %v1226, %v1226
      %v1259 = vmul.f32 %v1227, %v1227
      %v1260 = vmul.f32 %v1228, %v1228
      %v1261 = vmul.f32 %v1229, %v1229
      %v1262 = vmul.f32 %v1230, %v1230
      %v1263 = vmul.f32 %v1231, %v1231
      %v1264 = vmul.f32 %v1232, %v1232
      %v1265 = vmul.f32 %v1233, %v1233
      %v1266 = vmul.f32 %v1234, %v1234
      %v1267 = vmul.f32 %v1235, %v1235
      %v1268 = vmul.f32 %v1236, %v1236
      %v1269 = vmul.f32 %v1237, %v1237
      %v1270 = vmul.f32 %v1238, %v1238
      %v1271 = vmul.f32 %v1239, %v1239
      %v1272 = vmul.f32 %v1240, %v1240
      %v1273 = vmul.f32 %v1241, %v1241
      %v1274 = vmul.f32 %v1242, %v1242
      %v1275 = vmul.f32 %v1243, %v1243
      %v1276 = vmul.f32 %v1244, %v1244
      %v1277 = vmul.f32 %v1245, %v1245
      %v1278 = vmul.f32 %v1246, %v1246
      %v1279 = vmul.f32 %v1247, %v1247
      %v1280 = vmul.f32 %v1248, %v1248
      %v1281 = vmul.f32 %v1249, %v1249
      %v1282 = vmul.f32 %v1250, %v1250
      %v1283 = vmul.f32 %v1251, %v1251
      %v1284 = vmul.f32 %v1252, %v1252
      %v1285 = vmul.f32 %v1253, %v1253
      %v1286 = vld [vmem:[%s5] sm:$0x1]
      %v1288 = vlaneseq
      %v1289 = vshrl.u32 %v1288, 7
      %v1290 = vsub.s32 0, %v1289
      %v1291 = vrot.slane %v1286, %v1290
      %v1293 = vmul.f32 %v1254, %v1291
      %v1294 = vmul.f32 %v1255, %v1291
      %v1295 = vmul.f32 %v1256, %v1291
      %v1296 = vmul.f32 %v1257, %v1291
      %v1297 = vmul.f32 %v1258, %v1291
      %v1298 = vmul.f32 %v1259, %v1291
      %v1299 = vmul.f32 %v1260, %v1291
      %v1300 = vmul.f32 %v1261, %v1291
      %v1301 = vmul.f32 %v1262, %v1291
      %v1302 = vmul.f32 %v1263, %v1291
      %v1303 = vmul.f32 %v1264, %v1291
      %v1304 = vmul.f32 %v1265, %v1291
      %v1305 = vmul.f32 %v1266, %v1291
      %v1306 = vmul.f32 %v1267, %v1291
      %v1307 = vmul.f32 %v1268, %v1291
      %v1308 = vmul.f32 %v1269, %v1291
      %v1309 = vmul.f32 %v1270, %v1291
      %v1310 = vmul.f32 %v1271, %v1291
      %v1311 = vmul.f32 %v1272, %v1291
      %v1312 = vmul.f32 %v1273, %v1291
      %v1313 = vmul.f32 %v1274, %v1291
      %v1314 = vmul.f32 %v1275, %v1291
      %v1315 = vmul.f32 %v1276, %v1291
      %v1316 = vmul.f32 %v1277, %v1291
      %v1317 = vmul.f32 %v1278, %v1291
      %v1318 = vmul.f32 %v1279, %v1291
      %v1319 = vmul.f32 %v1280, %v1291
      %v1320 = vmul.f32 %v1281, %v1291
      %v1321 = vmul.f32 %v1282, %v1291
      %v1322 = vmul.f32 %v1283, %v1291
      %v1323 = vmul.f32 %v1284, %v1291
      %v1324 = vmul.f32 %v1285, %v1291
      %v1325 = vadd.f32 %v1293, %v1294
      %v1326 = vadd.f32 %v1325, %v1295
      %v1327 = vadd.f32 %v1326, %v1296
      %v1328 = vadd.f32 %v1327, %v1297
      %v1329 = vadd.f32 %v1328, %v1298
      %v1330 = vadd.f32 %v1329, %v1299
      %v1331 = vadd.f32 %v1330, %v1300
      %v1332 = vadd.f32 %v1331, %v1301
      %v1333 = vadd.f32 %v1332, %v1302
      %v1334 = vadd.f32 %v1333, %v1303
      %v1335 = vadd.f32 %v1334, %v1304
      %v1336 = vadd.f32 %v1335, %v1305
      %v1337 = vadd.f32 %v1336, %v1306
      %v1338 = vadd.f32 %v1337, %v1307
      %v1339 = vadd.f32 %v1338, %v1308
      %v1340 = vadd.f32 %v1339, %v1309
      %v1341 = vadd.f32 %v1340, %v1310
      %v1342 = vadd.f32 %v1341, %v1311
      %v1343 = vadd.f32 %v1342, %v1312
      %v1344 = vadd.f32 %v1343, %v1313
      %v1345 = vadd.f32 %v1344, %v1314
      %v1346 = vadd.f32 %v1345, %v1315
      %v1347 = vadd.f32 %v1346, %v1316
      %v1348 = vadd.f32 %v1347, %v1317
      %v1349 = vadd.f32 %v1348, %v1318
      %v1350 = vadd.f32 %v1349, %v1319
      %v1351 = vadd.f32 %v1350, %v1320
      %v1352 = vadd.f32 %v1351, %v1321
      %v1353 = vadd.f32 %v1352, %v1322
      %v1354 = vadd.f32 %v1353, %v1323
      %v1355 = vadd.f32 %v1354, %v1324
      %1356 = vst [vmem:[%s292] sm:$0xff] %v1355
      %s1357 = smul.u32 32, %s19
      %p1358 = scmp.lt.s32.totalorder %s1357, 63
      %s1359 = scalar_select %p1358, %s1357, 63
      %s1360 = smul.addr %s1359, 8
      %s1361 = scalar_lea.vmem %s6, %s1360
      %p1362 = scmp.lt.s32.totalorder %s19, 1
      %s1363 = scalar_select %p1362, %s19, 1
      %s1364 = smul.addr %s1363, 8
      %s1365 = scalar_lea.vmem %s7, %s1364
      // Predicated region
      $region45: #{model_distill_forward.1} parent=43 // pred_check
        %p1366 = pneg %p168
      $region46: #{model_distill_forward.1} parent=43 // pred_check_branch
        %1368 = sbr.rel (%p1366) target = $region48
      $region47: #{model_distill_forward.1} parent=43 // pred_region
        %s1369 = smul.u32 32, %s19
      $region48: #{model_distill_forward.1} parent=43 // pred_fallthru
        _
      // Predicated region
      $region49: #{model_distill_forward.1} parent=43 // pred_check
        %p1370 = pneg %p194
      $region50: #{model_distill_forward.1} parent=43 // pred_check_branch
        %1372 = sbr.rel (%p1370) target = $region52
      $region51: #{model_distill_forward.1} parent=43 // pred_region
        _
      $region52: #{model_distill_forward.1} parent=43 // pred_fallthru
        _
    $region44: #{model_distill_forward.1} parent=5 // pred_fallthru
      _
    %p1373 = scmp.le.s32.totalorder 2, %s14
    // Predicated region
    $region53: #{model_distill_forward.1} parent=5 // pred_check
      %p1374 = pneg %p1373
    $region54: #{model_distill_forward.1} parent=5 // pred_check_branch
      %1376 = sbr.rel (%p1374) target = $region56
    $region55: #{model_distill_forward.1} parent=5 // pred_region
      %s1377 = ssub.s32 %s14, 2
      // Predicated region
      $region57: #{model_distill_forward.1} parent=55 // pred_check
        %p1378 = pneg %p174
      $region58: #{model_distill_forward.1} parent=55 // pred_check_branch
        %1380 = sbr.rel (%p1378) target = $region60
      $region59: #{model_distill_forward.1} parent=55 // pred_region
        %s1381 = smul.u32 32, %s20
        %p1382 = scmp.lt.s32.totalorder %s1381, 63
        %s1383 = scalar_select %p1382, %s1381, 63
        %s1384 = smul.addr %s1383, 8
        %s1385 = scalar_lea.vmem %s6, %s1384
      $region60: #{model_distill_forward.1} parent=55 // pred_fallthru
        _
      // Predicated region
      $region61: #{model_distill_forward.1} parent=55 // pred_check
        %p1386 = pneg %p200
      $region62: #{model_distill_forward.1} parent=55 // pred_check_branch
        %1388 = sbr.rel (%p1386) target = $region64
      $region63: #{model_distill_forward.1} parent=55 // pred_region
        %p1389 = scmp.lt.s32.totalorder %s20, 1
        %s1390 = scalar_select %p1389, %s20, 1
        %s1391 = smul.addr %s1390, 8
        %s1392 = scalar_lea.vmem %s7, %s1391
      $region64: #{model_distill_forward.1} parent=55 // pred_fallthru
        _
    $region56: #{model_distill_forward.1} parent=5 // pred_fallthru
      _
  $region6: #{model_distill_forward.1} parent=0 // loop_footer
    %s18 = sadd.s32 1, %s14
  $region7: #{model_distill_forward.1} parent=0 // loop_footer_branch
    %13 = sbr.rel target = $region3
  $region8: #{model_distill_forward.1} parent=0 // loop_exit
    _

</llo_original>
